<compile_context>
chip_gen: v7x
topology: tpu7x:2x2x1
jax: 0.10.0
libtpu: 0.0.40
codegen_flags: <defaults>
</compile_context>

<pallas_src>
import jax
import jax.numpy as jnp
from jax.experimental import pallas as pl
from jax.experimental.pallas import tpu as pltpu


def _vae_kernel(x_ref, w_enc_ref, b_enc_ref,
                w_head_ref, b_head_ref,
                w_d1_ref, b_d1_ref,
                w_d2_ref, b_d2_ref,
                eps_ref,
                recon_ref, kld_part_ref):
    latent = eps_ref.shape[-1]

    # Encoder: Linear(in_dim, hid) + ReLU   (bf16 MXU inputs, f32 accumulation)
    x = x_ref[...].astype(jnp.bfloat16)
    h = jnp.dot(x, w_enc_ref[...], preferred_element_type=jnp.float32) + b_enc_ref[...]
    h = jnp.maximum(h, 0.0)

    # Fused mu / log-var heads: one (hid, 2*latent) matmul; latent is a multiple
    # of 128, so the slices fall on lane boundaries and are free.
    head = (jnp.dot(h.astype(jnp.bfloat16), w_head_ref[...],
                    preferred_element_type=jnp.float32) + b_head_ref[...])
    mu = head[:, :latent]
    logv = head[:, latent:]

    # Reparameterization: z = mu + exp(0.5*logv) * eps.  Reuse e -> exp(logv)=e*e.
    e = jnp.exp(0.5 * logv)
    z = mu + e * eps_ref[...]

    # Decoder: Linear(latent, hid) + ReLU + Linear(hid, in_dim)
    h2 = (jnp.dot(z.astype(jnp.bfloat16), w_d1_ref[...],
                  preferred_element_type=jnp.float32) + b_d1_ref[...])
    h2 = jnp.maximum(h2, 0.0)
    recon = (jnp.dot(h2.astype(jnp.bfloat16), w_d2_ref[...],
                     preferred_element_type=jnp.float32) + b_d2_ref[...])
    recon_ref[...] = recon.astype(recon_ref.dtype)

    # Lane-resident per-tile KLD partial: reduce only over the batch (sublane)
    # axis here.  Cross-lane reduce + (-0.5 / (B*latent)) scaling is done in the
    # wrapper, keeping the batch grid axis fully parallel (no carried state).
    part = jnp.sum(1.0 + logv - mu * mu - e * e, axis=0, keepdims=True)  # (1, latent)
    kld_part_ref[...] = part.reshape(1, 1, latent)


def _pick_batch_tile(B):
    # 256 fills the 2x256x256 MXU on v6e/v7x; 128 fills v5e's 4x128x128 MXU.
    for tb in (256, 128, 64, 32, 16, 8):
        if B >= tb and B % tb == 0:
            return tb
    return B  # tiny batch: one full-array block


def _vmem_budget_bytes(in_dim, hid, latent, tb):
    bf, f32 = 2, 4
    weights = (in_dim * hid + hid * 2 * latent + latent * hid + hid * in_dim) * bf
    biases = (hid + 2 * latent + hid + in_dim) * f32
    # x / eps / recon / kld-partial tiles are double-buffered by the pipeline.
    acts = 2 * (tb * in_dim * f32 + tb * latent * f32 + tb * in_dim * f32 + latent * f32)
    temps = (tb * hid + tb * 2 * latent + tb * hid + tb * in_dim) * f32
    return weights, weights + biases + acts + temps


def vae_forward(x, params, eps):
    """Fused VAE forward.

    x:      (B, in_dim) float32 or bfloat16
    eps:    (B, latent) float32 standard-normal noise
    params: dict with bf16 matmul weights (in, out) and f32 biases (1, out).
    Returns (recon (B, in_dim) x.dtype, kld scalar float32).
    """
    B, in_dim = x.shape
    latent = eps.shape[-1]
    hid = params["w_enc"].shape[1]
    assert latent % 128 == 0, "latent must be a multiple of 128 (lane-aligned mu/logv slices)"

    tb = _pick_batch_tile(B)
    grid = (B // tb,)

    weight_bytes, budget = _vmem_budget_bytes(in_dim, hid, latent, tb)
    # TODO(synk): switch to the K-tiled path instead of asserting once needed.
    assert weight_bytes < (40 << 20), "weights too large for whole-weight VMEM residency"
    vmem_limit = int(min(max(budget * 1.5, 16 << 20) + (4 << 20), 64 << 20))

    # Weight-stationary operands: constant index_map + single buffer (Buffered(1)).
    def _w(shape):
        return pl.BlockSpec(shape, lambda i: (0, 0), pipeline_mode=pl.Buffered(1))

    in_specs = [
        pl.BlockSpec((tb, in_dim), lambda i: (i, 0)),           # x (pipelined)
        _w((in_dim, hid)),                                      # w_enc (bf16)
        _w((1, hid)),                                           # b_enc
        _w((hid, 2 * latent)),                                  # w_head (bf16)
        _w((1, 2 * latent)),                                    # b_head
        _w((latent, hid)),                                      # w_d1 (bf16)
        _w((1, hid)),                                           # b_d1
        _w((hid, in_dim)),                                      # w_d2 (bf16)
        _w((1, in_dim)),                                        # b_d2
        pl.BlockSpec((tb, latent), lambda i: (i, 0)),           # eps (pipelined)
    ]
    out_specs = (
        pl.BlockSpec((tb, in_dim), lambda i: (i, 0)),           # recon
        pl.BlockSpec((1, 1, latent), lambda i: (i, 0, 0)),      # per-tile KLD partial
    )

    flops = 2 * B * (in_dim * hid + hid * 2 * latent + latent * hid + hid * in_dim)
    transcendentals = B * latent
    bytes_accessed = (
        x.size * x.dtype.itemsize
        + eps.size * eps.dtype.itemsize
        + sum(int(v.size) * v.dtype.itemsize for v in params.values())
        + B * in_dim * x.dtype.itemsize
        + grid[0] * latent * 4)

    recon, kld_parts = pl.pallas_call(
        _vae_kernel,
        grid=grid,
        in_specs=in_specs,
        out_specs=out_specs,
        out_shape=(
            jax.ShapeDtypeStruct((B, in_dim), x.dtype),
            jax.ShapeDtypeStruct((grid[0], 1, latent), jnp.float32),
        ),
        compiler_params=pltpu.CompilerParams(
            # Batch tiles are independent now (no carried KLD state) -> parallel,
            # so v7x's two TensorCores can split the grid.
            dimension_semantics=("parallel",),
            vmem_limit_bytes=vmem_limit),
        cost_estimate=pl.CostEstimate(
            flops=flops,
            transcendentals=transcendentals,
            bytes_accessed=bytes_accessed),
    )(
        x,
        params["w_enc"], params["b_enc"],
        params["w_head"], params["b_head"],
        params["w_d1"], params["b_d1"],
        params["w_d2"], params["b_d2"],
        eps,
    )

    # Final cross-lane/tile reduce + scaling (uses the true B, not tile counts).
    kld = -0.5 * jnp.sum(kld_parts) / jnp.float32(B * latent)
    return recon, kld


def init_params(key, in_dim, latent=128):
    """Deterministic parameter init (shapes match _VAE.__init__), mu/log heads fused."""
    hid = max(512, in_dim // 2)
    ks = jax.random.split(key, 10)

    def lin(kw, kb, fan_in, fan_out):
        bound = 1.0 / jnp.sqrt(float(fan_in))
        w = jax.random.uniform(kw, (fan_in, fan_out), jnp.float32, -bound, bound)
        b = jax.random.uniform(kb, (1, fan_out), jnp.float32, -bound, bound)
        return w, b

    w_enc, b_enc = lin(ks[0], ks[1], in_dim, hid)
    w_mu, b_mu = lin(ks[2], ks[3], hid, latent)
    w_log, b_log = lin(ks[4], ks[5], hid, latent)
    w_d1, b_d1 = lin(ks[6], ks[7], latent, hid)
    w_d2, b_d2 = lin(ks[8], ks[9], hid, in_dim)

    bf = jnp.bfloat16  # MXU-native; halves weight HBM->VMEM traffic.
    params = dict(
        w_enc=w_enc.astype(bf), b_enc=b_enc,
        w_head=jnp.concatenate([w_mu, w_log], axis=1).astype(bf),
        b_head=jnp.concatenate([b_mu, b_log], axis=1),
        w_d1=w_d1.astype(bf), b_d1=b_d1,
        w_d2=w_d2.astype(bf), b_d2=b_d2,
    )
    return params, hid


def _reference_forward(x, params, eps):
    """Pure-JAX reference doing the same bf16-input / f32-accumulate math."""
    bf, f32 = jnp.bfloat16, jnp.float32
    latent = eps.shape[-1]
    h = jnp.maximum(
        jnp.dot(x.astype(bf), params["w_enc"], preferred_element_type=f32)
        + params["b_enc"], 0.0)
    head = (jnp.dot(h.astype(bf), params["w_head"], preferred_element_type=f32)
            + params["b_head"])
    mu, logv = head[:, :latent], head[:, latent:]
    e = jnp.exp(0.5 * logv)
    z = mu + e * eps
    h2 = jnp.maximum(
        jnp.dot(z.astype(bf), params["w_d1"], preferred_element_type=f32)
        + params["b_d1"], 0.0)
    recon = (jnp.dot(h2.astype(bf), params["w_d2"], preferred_element_type=f32)
             + params["b_d2"])
    kld = -0.5 * jnp.mean(1.0 + logv - mu * mu - e * e)
    return recon, kld


if __name__ == "__main__":
    B = 8          # batch
    IN_DIM = 256   # input feature dim
    LATENT = 128

    key = jax.random.PRNGKey(0)
    k_x, k_eps, k_params = jax.random.split(key, 3)

    params, hid = init_params(k_params, IN_DIM, LATENT)
    x = jax.random.normal(k_x, (B, IN_DIM), jnp.float32)
    eps = jax.random.normal(k_eps, (B, LATENT), jnp.float32)

    recon, kld = vae_forward(x, params, eps)
    recon = jax.block_until_ready(recon)
    kld = jax.block_until_ready(kld)

    # Verify against a pure-JAX reference doing identical bf16/f32 math.
    recon_ref, kld_ref = _reference_forward(x, params, eps)
    assert recon.shape == (B, IN_DIM)
    assert jnp.allclose(recon, recon_ref, atol=2e-3, rtol=2e-3)
    assert jnp.allclose(kld, kld_ref, atol=1e-4, rtol=1e-3)

    print("KERNEL_OK")
</pallas_src>

<mosaic_0001>
module attributes {stable_mosaic.version = 11 : i64} {
  func.func @_vae_kernel(%arg0: i32, %arg1: memref<8x256xf32, #tpu.memory_space<vmem>>, %arg2: memref<256x512xbf16, #tpu.memory_space<vmem>>, %arg3: memref<1x512xf32, #tpu.memory_space<vmem>>, %arg4: memref<512x256xbf16, #tpu.memory_space<vmem>>, %arg5: memref<1x256xf32, #tpu.memory_space<vmem>>, %arg6: memref<128x512xbf16, #tpu.memory_space<vmem>>, %arg7: memref<1x512xf32, #tpu.memory_space<vmem>>, %arg8: memref<512x256xbf16, #tpu.memory_space<vmem>>, %arg9: memref<1x256xf32, #tpu.memory_space<vmem>>, %arg10: memref<8x128xf32, #tpu.memory_space<vmem>>, %arg11: memref<8x256xf32, #tpu.memory_space<vmem>>, %arg12: memref<1x1x128xf32, #tpu.memory_space<vmem>>) attributes {dimension_semantics = [#tpu.dimension_semantics<parallel>], iteration_bounds = array<i64: 1>, scalar_prefetch = 0 : i64, scratch_operands = 0 : i64, tpu.core_type = #tpu.core_type<tc>, window_params = [{transform_indices = @transform_0, window_bounds = array<i64: 8, 256>}, {pipeline_mode = #tpu.pipeline_mode<synchronous>, transform_indices = @transform_1, window_bounds = array<i64: 256, 512>}, {pipeline_mode = #tpu.pipeline_mode<synchronous>, transform_indices = @transform_2, window_bounds = array<i64: 1, 512>}, {pipeline_mode = #tpu.pipeline_mode<synchronous>, transform_indices = @transform_3, window_bounds = array<i64: 512, 256>}, {pipeline_mode = #tpu.pipeline_mode<synchronous>, transform_indices = @transform_4, window_bounds = array<i64: 1, 256>}, {pipeline_mode = #tpu.pipeline_mode<synchronous>, transform_indices = @transform_5, window_bounds = array<i64: 128, 512>}, {pipeline_mode = #tpu.pipeline_mode<synchronous>, transform_indices = @transform_6, window_bounds = array<i64: 1, 512>}, {pipeline_mode = #tpu.pipeline_mode<synchronous>, transform_indices = @transform_7, window_bounds = array<i64: 512, 256>}, {pipeline_mode = #tpu.pipeline_mode<synchronous>, transform_indices = @transform_8, window_bounds = array<i64: 1, 256>}, {transform_indices = @transform_9, window_bounds = array<i64: 8, 128>}, {transform_indices = @transform_10, window_bounds = array<i64: 8, 256>}, {transform_indices = @transform_11, window_bounds = array<i64: 1, 1, 128>}]} {
    %c0 = arith.constant 0 : index
    %c0_0 = arith.constant 0 : index
    %0 = vector.load %arg1[%c0, %c0_0] : memref<8x256xf32, #tpu.memory_space<vmem>>, vector<8x256xf32>
    %1 = arith.truncf %0 : vector<8x256xf32> to vector<8x256xbf16>
    %c0_1 = arith.constant 0 : index
    %c0_2 = arith.constant 0 : index
    %2 = vector.load %arg2[%c0_1, %c0_2] : memref<256x512xbf16, #tpu.memory_space<vmem>>, vector<256x512xbf16>
    %cst = arith.constant dense<0.000000e+00> : vector<8x512xf32>
    %3 = tpu.matmul %1, %2, %cst {dimension_numbers = #tpu.dot_dimension_numbers<[1], [0], [0], [1], [0, 0, 1, 1], [], []>} : vector<8x256xbf16>, vector<256x512xbf16>, vector<8x512xf32> -> vector<8x512xf32>
    %c0_3 = arith.constant 0 : index
    %c0_4 = arith.constant 0 : index
    %4 = vector.load %arg3[%c0_3, %c0_4] : memref<1x512xf32, #tpu.memory_space<vmem>>, vector<1x512xf32>
    %5 = vector.broadcast %4 : vector<1x512xf32> to vector<8x512xf32>
    %6 = arith.addf %3, %5 : vector<8x512xf32>
    %cst_5 = arith.constant 0.000000e+00 : f32
    %7 = vector.broadcast %cst_5 : f32 to vector<8x512xf32>
    %8 = arith.maximumf %6, %7 : vector<8x512xf32>
    %9 = arith.truncf %8 : vector<8x512xf32> to vector<8x512xbf16>
    %c0_6 = arith.constant 0 : index
    %c0_7 = arith.constant 0 : index
    %10 = vector.load %arg4[%c0_6, %c0_7] : memref<512x256xbf16, #tpu.memory_space<vmem>>, vector<512x256xbf16>
    %cst_8 = arith.constant dense<0.000000e+00> : vector<8x256xf32>
    %11 = tpu.matmul %9, %10, %cst_8 {dimension_numbers = #tpu.dot_dimension_numbers<[1], [0], [0], [1], [0, 0, 1, 1], [], []>} : vector<8x512xbf16>, vector<512x256xbf16>, vector<8x256xf32> -> vector<8x256xf32>
    %c0_9 = arith.constant 0 : index
    %c0_10 = arith.constant 0 : index
    %12 = vector.load %arg5[%c0_9, %c0_10] : memref<1x256xf32, #tpu.memory_space<vmem>>, vector<1x256xf32>
    %13 = vector.broadcast %12 : vector<1x256xf32> to vector<8x256xf32>
    %14 = arith.addf %11, %13 : vector<8x256xf32>
    %15 = vector.extract_strided_slice %14 {offsets = [0, 0], sizes = [8, 128], strides = [1, 1]} : vector<8x256xf32> to vector<8x128xf32>
    %16 = vector.extract_strided_slice %14 {offsets = [0, 128], sizes = [8, 128], strides = [1, 1]} : vector<8x256xf32> to vector<8x128xf32>
    %cst_11 = arith.constant 5.000000e-01 : f32
    %17 = vector.broadcast %cst_11 : f32 to vector<8x128xf32>
    %18 = arith.mulf %17, %16 : vector<8x128xf32>
    %19 = math.exp %18 : vector<8x128xf32>
    %c0_12 = arith.constant 0 : index
    %c0_13 = arith.constant 0 : index
    %20 = vector.load %arg10[%c0_12, %c0_13] : memref<8x128xf32, #tpu.memory_space<vmem>>, vector<8x128xf32>
    %21 = arith.mulf %19, %20 : vector<8x128xf32>
    %22 = arith.addf %15, %21 : vector<8x128xf32>
    %23 = arith.truncf %22 : vector<8x128xf32> to vector<8x128xbf16>
    %c0_14 = arith.constant 0 : index
    %c0_15 = arith.constant 0 : index
    %24 = vector.load %arg6[%c0_14, %c0_15] : memref<128x512xbf16, #tpu.memory_space<vmem>>, vector<128x512xbf16>
    %cst_16 = arith.constant dense<0.000000e+00> : vector<8x512xf32>
    %25 = tpu.matmul %23, %24, %cst_16 {dimension_numbers = #tpu.dot_dimension_numbers<[1], [0], [0], [1], [0, 0, 1, 1], [], []>} : vector<8x128xbf16>, vector<128x512xbf16>, vector<8x512xf32> -> vector<8x512xf32>
    %c0_17 = arith.constant 0 : index
    %c0_18 = arith.constant 0 : index
    %26 = vector.load %arg7[%c0_17, %c0_18] : memref<1x512xf32, #tpu.memory_space<vmem>>, vector<1x512xf32>
    %27 = vector.broadcast %26 : vector<1x512xf32> to vector<8x512xf32>
    %28 = arith.addf %25, %27 : vector<8x512xf32>
    %cst_19 = arith.constant 0.000000e+00 : f32
    %29 = vector.broadcast %cst_19 : f32 to vector<8x512xf32>
    %30 = arith.maximumf %28, %29 : vector<8x512xf32>
    %31 = arith.truncf %30 : vector<8x512xf32> to vector<8x512xbf16>
    %c0_20 = arith.constant 0 : index
    %c0_21 = arith.constant 0 : index
    %32 = vector.load %arg8[%c0_20, %c0_21] : memref<512x256xbf16, #tpu.memory_space<vmem>>, vector<512x256xbf16>
    %cst_22 = arith.constant dense<0.000000e+00> : vector<8x256xf32>
    %33 = tpu.matmul %31, %32, %cst_22 {dimension_numbers = #tpu.dot_dimension_numbers<[1], [0], [0], [1], [0, 0, 1, 1], [], []>} : vector<8x512xbf16>, vector<512x256xbf16>, vector<8x256xf32> -> vector<8x256xf32>
    %c0_23 = arith.constant 0 : index
    %c0_24 = arith.constant 0 : index
    %34 = vector.load %arg9[%c0_23, %c0_24] : memref<1x256xf32, #tpu.memory_space<vmem>>, vector<1x256xf32>
    %35 = vector.broadcast %34 : vector<1x256xf32> to vector<8x256xf32>
    %36 = arith.addf %33, %35 : vector<8x256xf32>
    %c0_25 = arith.constant 0 : index
    %c0_26 = arith.constant 0 : index
    %37 = vector.load %arg11[%c0_25, %c0_26] : memref<8x256xf32, #tpu.memory_space<vmem>>, vector<8x256xf32>
    tpu.vector_store %arg11[%c0_25, %c0_26], %36 {strides = array<i32>} : memref<8x256xf32, #tpu.memory_space<vmem>>, vector<8x256xf32>,
    %cst_27 = arith.constant 1.000000e+00 : f32
    %38 = vector.broadcast %cst_27 : f32 to vector<8x128xf32>
    %39 = arith.addf %38, %16 : vector<8x128xf32>
    %40 = arith.mulf %15, %15 : vector<8x128xf32>
    %41 = arith.subf %39, %40 : vector<8x128xf32>
    %42 = arith.mulf %19, %19 : vector<8x128xf32>
    %43 = arith.subf %41, %42 : vector<8x128xf32>
    %cst_28 = arith.constant dense<0.000000e+00> : vector<128xf32>
    %44 = vector.multi_reduction <add>, %43, %cst_28 [0] : vector<8x128xf32> to vector<128xf32>
    %45 = vector.shape_cast %44 : vector<128xf32> to vector<1x128xf32>
    %46 = vector.shape_cast %45 : vector<1x128xf32> to vector<1x1x128xf32>
    %c0_29 = arith.constant 0 : index
    %c0_30 = arith.constant 0 : index
    %c0_31 = arith.constant 0 : index
    %47 = vector.load %arg12[%c0_29, %c0_30, %c0_31] : memref<1x1x128xf32, #tpu.memory_space<vmem>>, vector<1x1x128xf32>
    tpu.vector_store %arg12[%c0_29, %c0_30, %c0_31], %46 {strides = array<i32>} : memref<1x1x128xf32, #tpu.memory_space<vmem>>, vector<1x1x128xf32>,
    return
  }
  func.func @transform_0(%arg0: i32) -> (i32, i32) {
    %c0_i32 = arith.constant 0 : i32
    %c0_i32_0 = arith.constant 0 : i32
    return %arg0, %c0_i32 : i32, i32
  }
  func.func @transform_1(%arg0: i32) -> (i32, i32) {
    %c0_i32 = arith.constant 0 : i32
    %c0_i32_0 = arith.constant 0 : i32
    %c0_i32_1 = arith.constant 0 : i32
    return %c0_i32, %c0_i32_0 : i32, i32
  }
  func.func @transform_2(%arg0: i32) -> (i32, i32) {
    %c0_i32 = arith.constant 0 : i32
    %c0_i32_0 = arith.constant 0 : i32
    %c0_i32_1 = arith.constant 0 : i32
    return %c0_i32, %c0_i32_0 : i32, i32
  }
  func.func @transform_3(%arg0: i32) -> (i32, i32) {
    %c0_i32 = arith.constant 0 : i32
    %c0_i32_0 = arith.constant 0 : i32
    %c0_i32_1 = arith.constant 0 : i32
    return %c0_i32, %c0_i32_0 : i32, i32
  }
  func.func @transform_4(%arg0: i32) -> (i32, i32) {
    %c0_i32 = arith.constant 0 : i32
    %c0_i32_0 = arith.constant 0 : i32
    %c0_i32_1 = arith.constant 0 : i32
    return %c0_i32, %c0_i32_0 : i32, i32
  }
  func.func @transform_5(%arg0: i32) -> (i32, i32) {
    %c0_i32 = arith.constant 0 : i32
    %c0_i32_0 = arith.constant 0 : i32
    %c0_i32_1 = arith.constant 0 : i32
    return %c0_i32, %c0_i32_0 : i32, i32
  }
  func.func @transform_6(%arg0: i32) -> (i32, i32) {
    %c0_i32 = arith.constant 0 : i32
    %c0_i32_0 = arith.constant 0 : i32
    %c0_i32_1 = arith.constant 0 : i32
    return %c0_i32, %c0_i32_0 : i32, i32
  }
  func.func @transform_7(%arg0: i32) -> (i32, i32) {
    %c0_i32 = arith.constant 0 : i32
    %c0_i32_0 = arith.constant 0 : i32
    %c0_i32_1 = arith.constant 0 : i32
    return %c0_i32, %c0_i32_0 : i32, i32
  }
  func.func @transform_8(%arg0: i32) -> (i32, i32) {
    %c0_i32 = arith.constant 0 : i32
    %c0_i32_0 = arith.constant 0 : i32
    %c0_i32_1 = arith.constant 0 : i32
    return %c0_i32, %c0_i32_0 : i32, i32
  }
  func.func @transform_9(%arg0: i32) -> (i32, i32) {
    %c0_i32 = arith.constant 0 : i32
    %c0_i32_0 = arith.constant 0 : i32
    return %arg0, %c0_i32 : i32, i32
  }
  func.func @transform_10(%arg0: i32) -> (i32, i32) {
    %c0_i32 = arith.constant 0 : i32
    %c0_i32_0 = arith.constant 0 : i32
    return %arg0, %c0_i32 : i32, i32
  }
  func.func @transform_11(%arg0: i32) -> (i32, i32, i32) {
    %c0_i32 = arith.constant 0 : i32
    %c0_i32_0 = arith.constant 0 : i32
    %c0_i32_1 = arith.constant 0 : i32
    return %arg0, %c0_i32, %c0_i32_0 : i32, i32, i32
  }
}

</mosaic_0001>

<llo_original>
// kernel: tpu_custom_call.1
$region0: #{tpu_custom_call.1}
  #allocation0 [shape = 'u32[]', space=smem, size = 0x4, offset = 0x4, fixed_abs, tag = 'smem constant byte address 0x4 - core index']
  #allocation1 [shape = 'u32[144,128]{1,0:T(1,128)}', space=vmem, size = 0x12000, scoped, tag = 'internal scratch']
  %s0 = inlined_call_operand.hbm [shape: f32[8,256], index: 0, kind: input, shape index: {}]
  %s1 = inlined_call_operand.hbm [shape: bf16[256,512], index: 1, kind: input, shape index: {}]
  %s2 = inlined_call_operand.vmem [shape: f32[1,512], index: 2, kind: input, shape index: {}]
  %s3 = inlined_call_operand.hbm [shape: bf16[512,256], index: 3, kind: input, shape index: {}]
  %s4 = inlined_call_operand.vmem [shape: f32[1,256], index: 4, kind: input, shape index: {}]
  %s5 = inlined_call_operand.hbm [shape: bf16[128,512], index: 5, kind: input, shape index: {}]
  %s6 = inlined_call_operand.vmem [shape: f32[1,512], index: 6, kind: input, shape index: {}]
  %s7 = inlined_call_operand.hbm [shape: bf16[512,256], index: 7, kind: input, shape index: {}]
  %s8 = inlined_call_operand.vmem [shape: f32[1,256], index: 8, kind: input, shape index: {}]
  %s9 = inlined_call_operand.vmem [shape: f32[8,128], index: 9, kind: input, shape index: {}]
  %s10 = inlined_call_operand.hbm [shape: f32[8,256], index: 10, kind: output, shape index: {0}]
  %s11 = inlined_call_operand.hbm [shape: f32[1,1,128], index: 11, kind: output, shape index: {1}]
  %12 = xla_tuple %s10, %s11
  %s13 = sld [smem:[#allocation0]]
  $region78: #{tpu_custom_call.1} parent=0
    _
  %s15 = ssub.s32 1, %s13
  %s16 = scalar_select 0, %s15, %s13
  $region1: #{tpu_custom_call.1} parent=0
    #allocation2 [shape = 'u8[8192]{0}', space=vmem, size = 0x2000, scoped, tag = 'input window, operand 0, single buffered']
    #allocation3 [shape = 's32[1]{0}', space=sflag, size = 0x4, scoped, tag = 'scoped memory for tpu_custom_call.1']
    #allocation4 [shape = 's32[1]{0}', space=sflag, size = 0x4, scoped, tag = 'scoped memory for tpu_custom_call.1']
    #allocation5 [shape = 'u8[262144]{0}', space=vmem, size = 0x40000, scoped, tag = 'input window, operand 1, single buffered']
    #allocation6 [shape = 's32[1]{0}', space=sflag, size = 0x4, scoped, tag = 'scoped memory for tpu_custom_call.1']
    #allocation7 [shape = 'u8[262144]{0}', space=vmem, size = 0x40000, scoped, tag = 'input window, operand 3, single buffered']
    #allocation8 [shape = 'u8[131072]{0}', space=vmem, size = 0x20000, scoped, tag = 'input window, operand 5, single buffered']
    #allocation9 [shape = 's32[1]{0}', space=sflag, size = 0x4, scoped, tag = 'scoped memory for tpu_custom_call.1']
    #allocation10 [shape = 'u8[262144]{0}', space=vmem, size = 0x40000, scoped, tag = 'input window, operand 7, single buffered']
    #allocation11 [shape = 'u8[8192]{0}', space=vmem, size = 0x2000, scoped, tag = 'output window, operand 0, single buffered']
    #allocation12 [shape = 'u8[512]{0}', space=vmem, size = 0x400, scoped, tag = 'output window, operand 1, single buffered']
    #allocation13 [shape = 's32[1]{0}', space=sflag, size = 0x4, scoped, tag = 'scoped memory for tpu_custom_call.1']
    %17 = vsyncpa [#allocation3], 0
    %18 = vsyncpa [#allocation6], 0
    %19 = vsyncpa [#allocation9], 0
    %20 = vsyncpa [#allocation4], 0
    %21 = vsyncpa [#allocation13], 0
    // Predicated region
    $region2: #{tpu_custom_call.1} parent=1 // pred_check
      _
    $region3: #{tpu_custom_call.1} parent=1 // pred_check_branch
      %23 = sbr.rel (0) target = $region5
    $region4: #{tpu_custom_call.1} parent=1 // pred_region
      %s25 = ssub.s32 256, 256
      %26 = vsyncadd [#allocation3], %s25
      %s28 = sshll.u32 [#allocation2], 4
      %s29 = int_to_ptr.vmem [resolvable:$true] %s28
      %31 = dma.hbm_to_vmem [thread:$0]  %s0, 256, %s29, [#allocation3]
    $region5: #{tpu_custom_call.1} parent=1 // pred_fallthru
      _
    // Predicated region
    $region6: #{tpu_custom_call.1} parent=1 // pred_check
      _
    $region7: #{tpu_custom_call.1} parent=1 // pred_check_branch
      %33 = sbr.rel (0) target = $region9
    $region8: #{tpu_custom_call.1} parent=1 // pred_region
      %s35 = ssub.s32 8192, 8192
      %36 = vsyncadd [#allocation6], %s35
      %s37 = sshll.u32 [#allocation5], 4
      %s38 = int_to_ptr.vmem [resolvable:$true] %s37
      %43 = dma.hbm_to_vmem [thread:$0]  %s1, 8192, %s38, [#allocation6], 256, 256, 16
    $region9: #{tpu_custom_call.1} parent=1 // pred_fallthru
      _
    // Predicated region
    $region10: #{tpu_custom_call.1} parent=1 // pred_check
      _
    $region11: #{tpu_custom_call.1} parent=1 // pred_check_branch
      %45 = sbr.rel (0) target = $region13
    $region12: #{tpu_custom_call.1} parent=1 // pred_region
      _
    $region13: #{tpu_custom_call.1} parent=1 // pred_fallthru
      _
    // Predicated region
    $region14: #{tpu_custom_call.1} parent=1 // pred_check
      _
    $region15: #{tpu_custom_call.1} parent=1 // pred_check_branch
      %47 = sbr.rel (0) target = $region17
    $region16: #{tpu_custom_call.1} parent=1 // pred_region
      %s49 = ssub.s32 8192, 8192
      %50 = vsyncadd [#allocation6], %s49
      %s51 = sshll.u32 [#allocation7], 4
      %s52 = int_to_ptr.vmem [resolvable:$true] %s51
      %57 = dma.hbm_to_vmem [thread:$0]  %s3, 8192, %s52, [#allocation6], 128, 128, 8
    $region17: #{tpu_custom_call.1} parent=1 // pred_fallthru
      _
    // Predicated region
    $region18: #{tpu_custom_call.1} parent=1 // pred_check
      _
    $region19: #{tpu_custom_call.1} parent=1 // pred_check_branch
      %59 = sbr.rel (0) target = $region21
    $region20: #{tpu_custom_call.1} parent=1 // pred_region
      _
    $region21: #{tpu_custom_call.1} parent=1 // pred_fallthru
      _
    // Predicated region
    $region22: #{tpu_custom_call.1} parent=1 // pred_check
      _
    $region23: #{tpu_custom_call.1} parent=1 // pred_check_branch
      %61 = sbr.rel (0) target = $region25
    $region24: #{tpu_custom_call.1} parent=1 // pred_region
      %s63 = ssub.s32 4096, 4096
      %64 = vsyncadd [#allocation9], %s63
      %s65 = sshll.u32 [#allocation8], 4
      %s66 = int_to_ptr.vmem [resolvable:$true] %s65
      %71 = dma.hbm_to_vmem [thread:$0]  %s5, 4096, %s66, [#allocation9], 256, 256, 16
    $region25: #{tpu_custom_call.1} parent=1 // pred_fallthru
      _
    // Predicated region
    $region26: #{tpu_custom_call.1} parent=1 // pred_check
      _
    $region27: #{tpu_custom_call.1} parent=1 // pred_check_branch
      %73 = sbr.rel (0) target = $region29
    $region28: #{tpu_custom_call.1} parent=1 // pred_region
      _
    $region29: #{tpu_custom_call.1} parent=1 // pred_fallthru
      _
    // Predicated region
    $region30: #{tpu_custom_call.1} parent=1 // pred_check
      _
    $region31: #{tpu_custom_call.1} parent=1 // pred_check_branch
      %75 = sbr.rel (0) target = $region33
    $region32: #{tpu_custom_call.1} parent=1 // pred_region
      %s77 = ssub.s32 8192, 8192
      %78 = vsyncadd [#allocation9], %s77
      %s79 = sshll.u32 [#allocation10], 4
      %s80 = int_to_ptr.vmem [resolvable:$true] %s79
      %85 = dma.hbm_to_vmem [thread:$0]  %s7, 8192, %s80, [#allocation9], 128, 128, 8
    $region33: #{tpu_custom_call.1} parent=1 // pred_fallthru
      _
    // Predicated region
    $region34: #{tpu_custom_call.1} parent=1 // pred_check
      _
    $region35: #{tpu_custom_call.1} parent=1 // pred_check_branch
      %87 = sbr.rel (0) target = $region37
    $region36: #{tpu_custom_call.1} parent=1 // pred_region
      _
    $region37: #{tpu_custom_call.1} parent=1 // pred_fallthru
      _
    // Predicated region
    $region38: #{tpu_custom_call.1} parent=1 // pred_check
      _
    $region39: #{tpu_custom_call.1} parent=1 // pred_check_branch
      %89 = sbr.rel (0) target = $region41
    $region40: #{tpu_custom_call.1} parent=1 // pred_region
      _
    $region41: #{tpu_custom_call.1} parent=1 // pred_fallthru
      _
    // Predicated region
    $region42: #{tpu_custom_call.1} parent=1 // pred_check
      _
    $region43: #{tpu_custom_call.1} parent=1 // pred_check_branch
      %91 = sbr.rel (0) target = $region45
    $region44: #{tpu_custom_call.1} parent=1 // pred_region
      %92 = dma.done [#allocation3], 256
    $region45: #{tpu_custom_call.1} parent=1 // pred_fallthru
      _
    // Predicated region
    $region46: #{tpu_custom_call.1} parent=1 // pred_check
      _
    $region47: #{tpu_custom_call.1} parent=1 // pred_check_branch
      %94 = sbr.rel (0) target = $region49
    $region48: #{tpu_custom_call.1} parent=1 // pred_region
      %95 = dma.done [#allocation6], 8192
    $region49: #{tpu_custom_call.1} parent=1 // pred_fallthru
      _
    // Predicated region
    $region50: #{tpu_custom_call.1} parent=1 // pred_check
      _
    $region51: #{tpu_custom_call.1} parent=1 // pred_check_branch
      %97 = sbr.rel (0) target = $region53
    $region52: #{tpu_custom_call.1} parent=1 // pred_region
      %98 = dma.done [#allocation6], 8192
    $region53: #{tpu_custom_call.1} parent=1 // pred_fallthru
      _
    // Predicated region
    $region54: #{tpu_custom_call.1} parent=1 // pred_check
      _
    $region55: #{tpu_custom_call.1} parent=1 // pred_check_branch
      %100 = sbr.rel (0) target = $region57
    $region56: #{tpu_custom_call.1} parent=1 // pred_region
      %101 = dma.done [#allocation9], 4096
    $region57: #{tpu_custom_call.1} parent=1 // pred_fallthru
      _
    // Predicated region
    $region58: #{tpu_custom_call.1} parent=1 // pred_check
      _
    $region59: #{tpu_custom_call.1} parent=1 // pred_check_branch
      %103 = sbr.rel (0) target = $region61
    $region60: #{tpu_custom_call.1} parent=1 // pred_region
      %104 = dma.done [#allocation9], 8192
    $region61: #{tpu_custom_call.1} parent=1 // pred_fallthru
      _
    %v106 = vld [vmem:[#allocation2] sm:$0xff]
    %v107 = vld [vmem:[#allocation2 + $0x8] sm:$0xff]
    %v108 = vpack.c.bf16 %v106, %v106
    %v109 = vpack.c.bf16 %v107, %v107
    %v110 = vld [vmem:[#allocation5] sm:$0xff]
    %v111 = vld [vmem:[#allocation5 + $0x8] sm:$0xff]
    %v112 = vld [vmem:[#allocation5 + $0x10] sm:$0xff]
    %v113 = vld [vmem:[#allocation5 + $0x18] sm:$0xff]
    %v114 = vld [vmem:[#allocation5 + $0x20] sm:$0xff]
    %v115 = vld [vmem:[#allocation5 + $0x28] sm:$0xff]
    %v116 = vld [vmem:[#allocation5 + $0x30] sm:$0xff]
    %v117 = vld [vmem:[#allocation5 + $0x38] sm:$0xff]
    %v118 = vld [vmem:[#allocation5 + $0x40] sm:$0xff]
    %v119 = vld [vmem:[#allocation5 + $0x48] sm:$0xff]
    %v120 = vld [vmem:[#allocation5 + $0x50] sm:$0xff]
    %v121 = vld [vmem:[#allocation5 + $0x58] sm:$0xff]
    %v122 = vld [vmem:[#allocation5 + $0x60] sm:$0xff]
    %v123 = vld [vmem:[#allocation5 + $0x68] sm:$0xff]
    %v124 = vld [vmem:[#allocation5 + $0x70] sm:$0xff]
    %v125 = vld [vmem:[#allocation5 + $0x78] sm:$0xff]
    %v126 = vld [vmem:[#allocation5 + $0x80] sm:$0xff]
    %v127 = vld [vmem:[#allocation5 + $0x88] sm:$0xff]
    %v128 = vld [vmem:[#allocation5 + $0x90] sm:$0xff]
    %v129 = vld [vmem:[#allocation5 + $0x98] sm:$0xff]
    %v130 = vld [vmem:[#allocation5 + $0xa0] sm:$0xff]
    %v131 = vld [vmem:[#allocation5 + $0xa8] sm:$0xff]
    %v132 = vld [vmem:[#allocation5 + $0xb0] sm:$0xff]
    %v133 = vld [vmem:[#allocation5 + $0xb8] sm:$0xff]
    %v134 = vld [vmem:[#allocation5 + $0xc0] sm:$0xff]
    %v135 = vld [vmem:[#allocation5 + $0xc8] sm:$0xff]
    %v136 = vld [vmem:[#allocation5 + $0xd0] sm:$0xff]
    %v137 = vld [vmem:[#allocation5 + $0xd8] sm:$0xff]
    %v138 = vld [vmem:[#allocation5 + $0xe0] sm:$0xff]
    %v139 = vld [vmem:[#allocation5 + $0xe8] sm:$0xff]
    %v140 = vld [vmem:[#allocation5 + $0xf0] sm:$0xff]
    %v141 = vld [vmem:[#allocation5 + $0xf8] sm:$0xff]
    %v142 = vld [vmem:[#allocation5 + $0x100] sm:$0xff]
    %v143 = vld [vmem:[#allocation5 + $0x108] sm:$0xff]
    %v144 = vld [vmem:[#allocation5 + $0x110] sm:$0xff]
    %v145 = vld [vmem:[#allocation5 + $0x118] sm:$0xff]
    %v146 = vld [vmem:[#allocation5 + $0x120] sm:$0xff]
    %v147 = vld [vmem:[#allocation5 + $0x128] sm:$0xff]
    %v148 = vld [vmem:[#allocation5 + $0x130] sm:$0xff]
    %v149 = vld [vmem:[#allocation5 + $0x138] sm:$0xff]
    %v150 = vld [vmem:[#allocation5 + $0x140] sm:$0xff]
    %v151 = vld [vmem:[#allocation5 + $0x148] sm:$0xff]
    %v152 = vld [vmem:[#allocation5 + $0x150] sm:$0xff]
    %v153 = vld [vmem:[#allocation5 + $0x158] sm:$0xff]
    %v154 = vld [vmem:[#allocation5 + $0x160] sm:$0xff]
    %v155 = vld [vmem:[#allocation5 + $0x168] sm:$0xff]
    %v156 = vld [vmem:[#allocation5 + $0x170] sm:$0xff]
    %v157 = vld [vmem:[#allocation5 + $0x178] sm:$0xff]
    %v158 = vld [vmem:[#allocation5 + $0x180] sm:$0xff]
    %v159 = vld [vmem:[#allocation5 + $0x188] sm:$0xff]
    %v160 = vld [vmem:[#allocation5 + $0x190] sm:$0xff]
    %v161 = vld [vmem:[#allocation5 + $0x198] sm:$0xff]
    %v162 = vld [vmem:[#allocation5 + $0x1a0] sm:$0xff]
    %v163 = vld [vmem:[#allocation5 + $0x1a8] sm:$0xff]
    %v164 = vld [vmem:[#allocation5 + $0x1b0] sm:$0xff]
    %v165 = vld [vmem:[#allocation5 + $0x1b8] sm:$0xff]
    %v166 = vld [vmem:[#allocation5 + $0x1c0] sm:$0xff]
    %v167 = vld [vmem:[#allocation5 + $0x1c8] sm:$0xff]
    %v168 = vld [vmem:[#allocation5 + $0x1d0] sm:$0xff]
    %v169 = vld [vmem:[#allocation5 + $0x1d8] sm:$0xff]
    %v170 = vld [vmem:[#allocation5 + $0x1e0] sm:$0xff]
    %v171 = vld [vmem:[#allocation5 + $0x1e8] sm:$0xff]
    %v172 = vld [vmem:[#allocation5 + $0x1f0] sm:$0xff]
    %v173 = vld [vmem:[#allocation5 + $0x1f8] sm:$0xff]
    %v174 = vld [vmem:[%s2] sm:$0xf]
    %v176 = vlaneseq
    %v177 = vshrl.u32 %v176, 7
    %v178 = vsub.s32 0, %v177
    %v179 = vrot.slane %v174, %v178
    %v180 = vlaneseq
    %v181 = vshrl.u32 %v180, 7
    %v182 = vsub.s32 1, %v181
    %v183 = vrot.slane %v174, %v182
    %v184 = vlaneseq
    %v185 = vshrl.u32 %v184, 7
    %v186 = vsub.s32 2, %v185
    %v187 = vrot.slane %v174, %v186
    %v188 = vlaneseq
    %v189 = vshrl.u32 %v188, 7
    %v190 = vsub.s32 3, %v189
    %v191 = vrot.slane %v174, %v190
    %v260 = vunpack.c.l.b16 %v110
    %v261 = vunpack.c.h.b16 %v110
    %v262 = vunpack.c.l.b16 %v111
    %v263 = vunpack.c.h.b16 %v111
    %v264 = vunpack.c.l.b16 %v112
    %v265 = vunpack.c.h.b16 %v112
    %v266 = vunpack.c.l.b16 %v113
    %v267 = vunpack.c.h.b16 %v113
    %v268 = vunpack.c.l.b16 %v114
    %v269 = vunpack.c.h.b16 %v114
    %v270 = vunpack.c.l.b16 %v115
    %v271 = vunpack.c.h.b16 %v115
    %v272 = vunpack.c.l.b16 %v116
    %v273 = vunpack.c.h.b16 %v116
    %v274 = vunpack.c.l.b16 %v117
    %v275 = vunpack.c.h.b16 %v117
    %v276 = vunpack.c.l.b16 %v118
    %v277 = vunpack.c.h.b16 %v118
    %v278 = vunpack.c.l.b16 %v119
    %v279 = vunpack.c.h.b16 %v119
    %v280 = vunpack.c.l.b16 %v120
    %v281 = vunpack.c.h.b16 %v120
    %v282 = vunpack.c.l.b16 %v121
    %v283 = vunpack.c.h.b16 %v121
    %v284 = vunpack.c.l.b16 %v122
    %v285 = vunpack.c.h.b16 %v122
    %v286 = vunpack.c.l.b16 %v123
    %v287 = vunpack.c.h.b16 %v123
    %v288 = vunpack.c.l.b16 %v124
    %v289 = vunpack.c.h.b16 %v124
    %v290 = vunpack.c.l.b16 %v125
    %v291 = vunpack.c.h.b16 %v125
    %v292 = vunpack.c.l.b16 %v126
    %v293 = vunpack.c.h.b16 %v126
    %v294 = vunpack.c.l.b16 %v127
    %v295 = vunpack.c.h.b16 %v127
    %v296 = vunpack.c.l.b16 %v128
    %v297 = vunpack.c.h.b16 %v128
    %v298 = vunpack.c.l.b16 %v129
    %v299 = vunpack.c.h.b16 %v129
    %v300 = vunpack.c.l.b16 %v130
    %v301 = vunpack.c.h.b16 %v130
    %v302 = vunpack.c.l.b16 %v131
    %v303 = vunpack.c.h.b16 %v131
    %v304 = vunpack.c.l.b16 %v132
    %v305 = vunpack.c.h.b16 %v132
    %v306 = vunpack.c.l.b16 %v133
    %v307 = vunpack.c.h.b16 %v133
    %v308 = vunpack.c.l.b16 %v134
    %v309 = vunpack.c.h.b16 %v134
    %v310 = vunpack.c.l.b16 %v135
    %v311 = vunpack.c.h.b16 %v135
    %v312 = vunpack.c.l.b16 %v136
    %v313 = vunpack.c.h.b16 %v136
    %v314 = vunpack.c.l.b16 %v137
    %v315 = vunpack.c.h.b16 %v137
    %v316 = vunpack.c.l.b16 %v138
    %v317 = vunpack.c.h.b16 %v138
    %v318 = vunpack.c.l.b16 %v139
    %v319 = vunpack.c.h.b16 %v139
    %v320 = vunpack.c.l.b16 %v140
    %v321 = vunpack.c.h.b16 %v140
    %v322 = vunpack.c.l.b16 %v141
    %v323 = vunpack.c.h.b16 %v141
    %v324 = vunpack.c.l.b16 %v142
    %v325 = vunpack.c.h.b16 %v142
    %v326 = vunpack.c.l.b16 %v143
    %v327 = vunpack.c.h.b16 %v143
    %v328 = vunpack.c.l.b16 %v144
    %v329 = vunpack.c.h.b16 %v144
    %v330 = vunpack.c.l.b16 %v145
    %v331 = vunpack.c.h.b16 %v145
    %v332 = vunpack.c.l.b16 %v146
    %v333 = vunpack.c.h.b16 %v146
    %v334 = vunpack.c.l.b16 %v147
    %v335 = vunpack.c.h.b16 %v147
    %v336 = vunpack.c.l.b16 %v148
    %v337 = vunpack.c.h.b16 %v148
    %v338 = vunpack.c.l.b16 %v149
    %v339 = vunpack.c.h.b16 %v149
    %v340 = vunpack.c.l.b16 %v150
    %v341 = vunpack.c.h.b16 %v150
    %v342 = vunpack.c.l.b16 %v151
    %v343 = vunpack.c.h.b16 %v151
    %v344 = vunpack.c.l.b16 %v152
    %v345 = vunpack.c.h.b16 %v152
    %v346 = vunpack.c.l.b16 %v153
    %v347 = vunpack.c.h.b16 %v153
    %v348 = vunpack.c.l.b16 %v154
    %v349 = vunpack.c.h.b16 %v154
    %v350 = vunpack.c.l.b16 %v155
    %v351 = vunpack.c.h.b16 %v155
    %v352 = vunpack.c.l.b16 %v156
    %v353 = vunpack.c.h.b16 %v156
    %v354 = vunpack.c.l.b16 %v157
    %v355 = vunpack.c.h.b16 %v157
    %v356 = vunpack.c.l.b16 %v158
    %v357 = vunpack.c.h.b16 %v158
    %v358 = vunpack.c.l.b16 %v159
    %v359 = vunpack.c.h.b16 %v159
    %v360 = vunpack.c.l.b16 %v160
    %v361 = vunpack.c.h.b16 %v160
    %v362 = vunpack.c.l.b16 %v161
    %v363 = vunpack.c.h.b16 %v161
    %v364 = vunpack.c.l.b16 %v162
    %v365 = vunpack.c.h.b16 %v162
    %v366 = vunpack.c.l.b16 %v163
    %v367 = vunpack.c.h.b16 %v163
    %v368 = vunpack.c.l.b16 %v164
    %v369 = vunpack.c.h.b16 %v164
    %v370 = vunpack.c.l.b16 %v165
    %v371 = vunpack.c.h.b16 %v165
    %v372 = vunpack.c.l.b16 %v166
    %v373 = vunpack.c.h.b16 %v166
    %v374 = vunpack.c.l.b16 %v167
    %v375 = vunpack.c.h.b16 %v167
    %v376 = vunpack.c.l.b16 %v168
    %v377 = vunpack.c.h.b16 %v168
    %v378 = vunpack.c.l.b16 %v169
    %v379 = vunpack.c.h.b16 %v169
    %v380 = vunpack.c.l.b16 %v170
    %v381 = vunpack.c.h.b16 %v170
    %v382 = vunpack.c.l.b16 %v171
    %v383 = vunpack.c.h.b16 %v171
    %v384 = vunpack.c.l.b16 %v172
    %v385 = vunpack.c.h.b16 %v172
    %v386 = vunpack.c.l.b16 %v173
    %v387 = vunpack.c.h.b16 %v173
    %v388 = vpack.c.b16 %v264, %v260
    %v389 = vpack.c.b16 %v265, %v261
    %v390 = vpack.c.b16 %v266, %v262
    %v391 = vpack.c.b16 %v267, %v263
    %v392 = vpack.c.b16 %v272, %v268
    %v393 = vpack.c.b16 %v273, %v269
    %v394 = vpack.c.b16 %v274, %v270
    %v395 = vpack.c.b16 %v275, %v271
    %v396 = vpack.c.b16 %v280, %v276
    %v397 = vpack.c.b16 %v281, %v277
    %v398 = vpack.c.b16 %v282, %v278
    %v399 = vpack.c.b16 %v283, %v279
    %v400 = vpack.c.b16 %v288, %v284
    %v401 = vpack.c.b16 %v289, %v285
    %v402 = vpack.c.b16 %v290, %v286
    %v403 = vpack.c.b16 %v291, %v287
    %v404 = vpack.c.b16 %v296, %v292
    %v405 = vpack.c.b16 %v297, %v293
    %v406 = vpack.c.b16 %v298, %v294
    %v407 = vpack.c.b16 %v299, %v295
    %v408 = vpack.c.b16 %v304, %v300
    %v409 = vpack.c.b16 %v305, %v301
    %v410 = vpack.c.b16 %v306, %v302
    %v411 = vpack.c.b16 %v307, %v303
    %v412 = vpack.c.b16 %v312, %v308
    %v413 = vpack.c.b16 %v313, %v309
    %v414 = vpack.c.b16 %v314, %v310
    %v415 = vpack.c.b16 %v315, %v311
    %v416 = vpack.c.b16 %v320, %v316
    %v417 = vpack.c.b16 %v321, %v317
    %v418 = vpack.c.b16 %v322, %v318
    %v419 = vpack.c.b16 %v323, %v319
    %v420 = vpack.c.b16 %v328, %v324
    %v421 = vpack.c.b16 %v329, %v325
    %v422 = vpack.c.b16 %v330, %v326
    %v423 = vpack.c.b16 %v331, %v327
    %v424 = vpack.c.b16 %v336, %v332
    %v425 = vpack.c.b16 %v337, %v333
    %v426 = vpack.c.b16 %v338, %v334
    %v427 = vpack.c.b16 %v339, %v335
    %v428 = vpack.c.b16 %v344, %v340
    %v429 = vpack.c.b16 %v345, %v341
    %v430 = vpack.c.b16 %v346, %v342
    %v431 = vpack.c.b16 %v347, %v343
    %v432 = vpack.c.b16 %v352, %v348
    %v433 = vpack.c.b16 %v353, %v349
    %v434 = vpack.c.b16 %v354, %v350
    %v435 = vpack.c.b16 %v355, %v351
    %v436 = vpack.c.b16 %v360, %v356
    %v437 = vpack.c.b16 %v361, %v357
    %v438 = vpack.c.b16 %v362, %v358
    %v439 = vpack.c.b16 %v363, %v359
    %v440 = vpack.c.b16 %v368, %v364
    %v441 = vpack.c.b16 %v369, %v365
    %v442 = vpack.c.b16 %v370, %v366
    %v443 = vpack.c.b16 %v371, %v367
    %v444 = vpack.c.b16 %v376, %v372
    %v445 = vpack.c.b16 %v377, %v373
    %v446 = vpack.c.b16 %v378, %v374
    %v447 = vpack.c.b16 %v379, %v375
    %v448 = vpack.c.b16 %v384, %v380
    %v449 = vpack.c.b16 %v385, %v381
    %v450 = vpack.c.b16 %v386, %v382
    %v451 = vpack.c.b16 %v387, %v383
    %516 = vmatprep.subr.bf16.mxu0 %v389
    %517 = vmatpush1.bf16.msra.mxu0 %v388
    %518 = vmatprep.subr.bf16.mxu0 %v393
    %519 = vmatpush1.bf16.msra.mxu0 %v392
    %520 = vmatprep.subr.bf16.mxu0 %v397
    %521 = vmatpush1.bf16.msra.mxu0 %v396
    %522 = vmatprep.subr.bf16.mxu0 %v401
    %523 = vmatpush1.bf16.msra.mxu0 %v400
    %524 = vmatprep.subr.bf16.mxu0 %v405
    %525 = vmatpush1.bf16.msra.mxu0 %v404
    %526 = vmatprep.subr.bf16.mxu0 %v409
    %527 = vmatpush1.bf16.msra.mxu0 %v408
    %528 = vmatprep.subr.bf16.mxu0 %v413
    %529 = vmatpush1.bf16.msra.mxu0 %v412
    %530 = vmatprep.subr.bf16.mxu0 %v417
    %531 = vmatpush1.bf16.msra.mxu0 %v416
    %532 = vmatprep.subr.bf16.mxu0 %v421
    %533 = vmatpush1.bf16.msra.mxu0 %v420
    %534 = vmatprep.subr.bf16.mxu0 %v425
    %535 = vmatpush1.bf16.msra.mxu0 %v424
    %536 = vmatprep.subr.bf16.mxu0 %v429
    %537 = vmatpush1.bf16.msra.mxu0 %v428
    %538 = vmatprep.subr.bf16.mxu0 %v433
    %539 = vmatpush1.bf16.msra.mxu0 %v432
    %540 = vmatprep.subr.bf16.mxu0 %v437
    %541 = vmatpush1.bf16.msra.mxu0 %v436
    %542 = vmatprep.subr.bf16.mxu0 %v441
    %543 = vmatpush1.bf16.msra.mxu0 %v440
    %544 = vmatprep.subr.bf16.mxu0 %v445
    %545 = vmatpush1.bf16.msra.mxu0 %v444
    %546 = vmatprep.subr.bf16.mxu0 %v449
    %547 = vmatpush1.bf16.msra.mxu0 %v448
    %548 = vmatprep.mubr.bf16.mxu0 %v109
    %549 = vmatmul.mubr.bf16.gmra.mrb[0].mxu0 %v108
    %v550 = vpop.f32.mrb[0].mxu0
    %v551 = vadd.f32 %v179, %v550
    %v552 = vpop.f32.mrb[0].mxu0
    %v553 = vadd.f32 %v183, %v552
    %v554 = vpop.f32.mrb[0].mxu0
    %v555 = vpop.f32.mrb[0].mxu0
    %556 = vdwg.mxu0
    %557 = vmatprep.subr.bf16.mxu0 %v391
    %558 = vmatpush1.bf16.msra.mxu0 %v390
    %559 = vmatprep.subr.bf16.mxu0 %v395
    %560 = vmatpush1.bf16.msra.mxu0 %v394
    %561 = vmatprep.subr.bf16.mxu0 %v399
    %562 = vmatpush1.bf16.msra.mxu0 %v398
    %563 = vmatprep.subr.bf16.mxu0 %v403
    %564 = vmatpush1.bf16.msra.mxu0 %v402
    %565 = vmatprep.subr.bf16.mxu0 %v407
    %566 = vmatpush1.bf16.msra.mxu0 %v406
    %567 = vmatprep.subr.bf16.mxu0 %v411
    %568 = vmatpush1.bf16.msra.mxu0 %v410
    %569 = vmatprep.subr.bf16.mxu0 %v415
    %570 = vmatpush1.bf16.msra.mxu0 %v414
    %571 = vmatprep.subr.bf16.mxu0 %v419
    %572 = vmatpush1.bf16.msra.mxu0 %v418
    %573 = vmatprep.subr.bf16.mxu0 %v423
    %574 = vmatpush1.bf16.msra.mxu0 %v422
    %575 = vmatprep.subr.bf16.mxu0 %v427
    %576 = vmatpush1.bf16.msra.mxu0 %v426
    %577 = vmatprep.subr.bf16.mxu0 %v431
    %578 = vmatpush1.bf16.msra.mxu0 %v430
    %579 = vmatprep.subr.bf16.mxu0 %v435
    %580 = vmatpush1.bf16.msra.mxu0 %v434
    %581 = vmatprep.subr.bf16.mxu0 %v439
    %582 = vmatpush1.bf16.msra.mxu0 %v438
    %583 = vmatprep.subr.bf16.mxu0 %v443
    %584 = vmatpush1.bf16.msra.mxu0 %v442
    %585 = vmatprep.subr.bf16.mxu0 %v447
    %586 = vmatpush1.bf16.msra.mxu0 %v446
    %587 = vmatprep.subr.bf16.mxu0 %v451
    %588 = vmatpush1.bf16.msra.mxu0 %v450
    %589 = vmatprep.mubr.bf16.mxu0 %v109
    %590 = vmatmul.mubr.bf16.gmra.mrb[0].mxu0 %v108
    %v591 = vpop.f32.mrb[0].mxu0
    %v592 = vadd.f32 %v187, %v591
    %v593 = vpop.f32.mrb[0].mxu0
    %v594 = vadd.f32 %v191, %v593
    %v595 = vpop.f32.mrb[0].mxu0
    %v596 = vpop.f32.mrb[0].mxu0
    %597 = vdwg.mxu0
    %v598 = vmax.f32 %v551, 0.0
    %v599 = vmax.f32 %v553, 0.0
    %v600 = vmax.f32 %v592, 0.0
    %v601 = vmax.f32 %v594, 0.0
    %v602 = vpack.c.bf16 %v598, %v598
    %v603 = vpack.c.bf16 %v599, %v599
    %v604 = vpack.c.bf16 %v600, %v600
    %v605 = vpack.c.bf16 %v601, %v601
    %v606 = vld [vmem:[#allocation7] sm:$0xff]
    %v607 = vld [vmem:[#allocation7 + $0x8] sm:$0xff]
    %v608 = vld [vmem:[#allocation7 + $0x10] sm:$0xff]
    %v609 = vld [vmem:[#allocation7 + $0x18] sm:$0xff]
    %v610 = vld [vmem:[#allocation7 + $0x20] sm:$0xff]
    %v611 = vld [vmem:[#allocation7 + $0x28] sm:$0xff]
    %v612 = vld [vmem:[#allocation7 + $0x30] sm:$0xff]
    %v613 = vld [vmem:[#allocation7 + $0x38] sm:$0xff]
    %v614 = vld [vmem:[#allocation7 + $0x40] sm:$0xff]
    %v615 = vld [vmem:[#allocation7 + $0x48] sm:$0xff]
    %v616 = vld [vmem:[#allocation7 + $0x50] sm:$0xff]
    %v617 = vld [vmem:[#allocation7 + $0x58] sm:$0xff]
    %v618 = vld [vmem:[#allocation7 + $0x60] sm:$0xff]
    %v619 = vld [vmem:[#allocation7 + $0x68] sm:$0xff]
    %v620 = vld [vmem:[#allocation7 + $0x70] sm:$0xff]
    %v621 = vld [vmem:[#allocation7 + $0x78] sm:$0xff]
    %v622 = vld [vmem:[#allocation7 + $0x80] sm:$0xff]
    %v623 = vld [vmem:[#allocation7 + $0x88] sm:$0xff]
    %v624 = vld [vmem:[#allocation7 + $0x90] sm:$0xff]
    %v625 = vld [vmem:[#allocation7 + $0x98] sm:$0xff]
    %v626 = vld [vmem:[#allocation7 + $0xa0] sm:$0xff]
    %v627 = vld [vmem:[#allocation7 + $0xa8] sm:$0xff]
    %v628 = vld [vmem:[#allocation7 + $0xb0] sm:$0xff]
    %v629 = vld [vmem:[#allocation7 + $0xb8] sm:$0xff]
    %v630 = vld [vmem:[#allocation7 + $0xc0] sm:$0xff]
    %v631 = vld [vmem:[#allocation7 + $0xc8] sm:$0xff]
    %v632 = vld [vmem:[#allocation7 + $0xd0] sm:$0xff]
    %v633 = vld [vmem:[#allocation7 + $0xd8] sm:$0xff]
    %v634 = vld [vmem:[#allocation7 + $0xe0] sm:$0xff]
    %v635 = vld [vmem:[#allocation7 + $0xe8] sm:$0xff]
    %v636 = vld [vmem:[#allocation7 + $0xf0] sm:$0xff]
    %v637 = vld [vmem:[#allocation7 + $0xf8] sm:$0xff]
    %v638 = vld [vmem:[#allocation7 + $0x100] sm:$0xff]
    %v639 = vld [vmem:[#allocation7 + $0x108] sm:$0xff]
    %v640 = vld [vmem:[#allocation7 + $0x110] sm:$0xff]
    %v641 = vld [vmem:[#allocation7 + $0x118] sm:$0xff]
    %v642 = vld [vmem:[#allocation7 + $0x120] sm:$0xff]
    %v643 = vld [vmem:[#allocation7 + $0x128] sm:$0xff]
    %v644 = vld [vmem:[#allocation7 + $0x130] sm:$0xff]
    %v645 = vld [vmem:[#allocation7 + $0x138] sm:$0xff]
    %v646 = vld [vmem:[#allocation7 + $0x140] sm:$0xff]
    %v647 = vld [vmem:[#allocation7 + $0x148] sm:$0xff]
    %v648 = vld [vmem:[#allocation7 + $0x150] sm:$0xff]
    %v649 = vld [vmem:[#allocation7 + $0x158] sm:$0xff]
    %v650 = vld [vmem:[#allocation7 + $0x160] sm:$0xff]
    %v651 = vld [vmem:[#allocation7 + $0x168] sm:$0xff]
    %v652 = vld [vmem:[#allocation7 + $0x170] sm:$0xff]
    %v653 = vld [vmem:[#allocation7 + $0x178] sm:$0xff]
    %v654 = vld [vmem:[#allocation7 + $0x180] sm:$0xff]
    %v655 = vld [vmem:[#allocation7 + $0x188] sm:$0xff]
    %v656 = vld [vmem:[#allocation7 + $0x190] sm:$0xff]
    %v657 = vld [vmem:[#allocation7 + $0x198] sm:$0xff]
    %v658 = vld [vmem:[#allocation7 + $0x1a0] sm:$0xff]
    %v659 = vld [vmem:[#allocation7 + $0x1a8] sm:$0xff]
    %v660 = vld [vmem:[#allocation7 + $0x1b0] sm:$0xff]
    %v661 = vld [vmem:[#allocation7 + $0x1b8] sm:$0xff]
    %v662 = vld [vmem:[#allocation7 + $0x1c0] sm:$0xff]
    %v663 = vld [vmem:[#allocation7 + $0x1c8] sm:$0xff]
    %v664 = vld [vmem:[#allocation7 + $0x1d0] sm:$0xff]
    %v665 = vld [vmem:[#allocation7 + $0x1d8] sm:$0xff]
    %v666 = vld [vmem:[#allocation7 + $0x1e0] sm:$0xff]
    %v667 = vld [vmem:[#allocation7 + $0x1e8] sm:$0xff]
    %v668 = vld [vmem:[#allocation7 + $0x1f0] sm:$0xff]
    %v669 = vld [vmem:[#allocation7 + $0x1f8] sm:$0xff]
    %v670 = vld [vmem:[%s4] sm:$0x3]
    %v672 = vlaneseq
    %v673 = vshrl.u32 %v672, 7
    %v674 = vsub.s32 0, %v673
    %v675 = vrot.slane %v670, %v674
    %v676 = vlaneseq
    %v677 = vshrl.u32 %v676, 7
    %v678 = vsub.s32 1, %v677
    %v679 = vrot.slane %v670, %v678
    %v746 = vunpack.c.l.b16 %v606
    %v747 = vunpack.c.h.b16 %v606
    %v748 = vunpack.c.l.b16 %v607
    %v749 = vunpack.c.h.b16 %v607
    %v750 = vunpack.c.l.b16 %v608
    %v751 = vunpack.c.h.b16 %v608
    %v752 = vunpack.c.l.b16 %v609
    %v753 = vunpack.c.h.b16 %v609
    %v754 = vunpack.c.l.b16 %v610
    %v755 = vunpack.c.h.b16 %v610
    %v756 = vunpack.c.l.b16 %v611
    %v757 = vunpack.c.h.b16 %v611
    %v758 = vunpack.c.l.b16 %v612
    %v759 = vunpack.c.h.b16 %v612
    %v760 = vunpack.c.l.b16 %v613
    %v761 = vunpack.c.h.b16 %v613
    %v762 = vunpack.c.l.b16 %v614
    %v763 = vunpack.c.h.b16 %v614
    %v764 = vunpack.c.l.b16 %v615
    %v765 = vunpack.c.h.b16 %v615
    %v766 = vunpack.c.l.b16 %v616
    %v767 = vunpack.c.h.b16 %v616
    %v768 = vunpack.c.l.b16 %v617
    %v769 = vunpack.c.h.b16 %v617
    %v770 = vunpack.c.l.b16 %v618
    %v771 = vunpack.c.h.b16 %v618
    %v772 = vunpack.c.l.b16 %v619
    %v773 = vunpack.c.h.b16 %v619
    %v774 = vunpack.c.l.b16 %v620
    %v775 = vunpack.c.h.b16 %v620
    %v776 = vunpack.c.l.b16 %v621
    %v777 = vunpack.c.h.b16 %v621
    %v778 = vunpack.c.l.b16 %v622
    %v779 = vunpack.c.h.b16 %v622
    %v780 = vunpack.c.l.b16 %v623
    %v781 = vunpack.c.h.b16 %v623
    %v782 = vunpack.c.l.b16 %v624
    %v783 = vunpack.c.h.b16 %v624
    %v784 = vunpack.c.l.b16 %v625
    %v785 = vunpack.c.h.b16 %v625
    %v786 = vunpack.c.l.b16 %v626
    %v787 = vunpack.c.h.b16 %v626
    %v788 = vunpack.c.l.b16 %v627
    %v789 = vunpack.c.h.b16 %v627
    %v790 = vunpack.c.l.b16 %v628
    %v791 = vunpack.c.h.b16 %v628
    %v792 = vunpack.c.l.b16 %v629
    %v793 = vunpack.c.h.b16 %v629
    %v794 = vunpack.c.l.b16 %v630
    %v795 = vunpack.c.h.b16 %v630
    %v796 = vunpack.c.l.b16 %v631
    %v797 = vunpack.c.h.b16 %v631
    %v798 = vunpack.c.l.b16 %v632
    %v799 = vunpack.c.h.b16 %v632
    %v800 = vunpack.c.l.b16 %v633
    %v801 = vunpack.c.h.b16 %v633
    %v802 = vunpack.c.l.b16 %v634
    %v803 = vunpack.c.h.b16 %v634
    %v804 = vunpack.c.l.b16 %v635
    %v805 = vunpack.c.h.b16 %v635
    %v806 = vunpack.c.l.b16 %v636
    %v807 = vunpack.c.h.b16 %v636
    %v808 = vunpack.c.l.b16 %v637
    %v809 = vunpack.c.h.b16 %v637
    %v810 = vunpack.c.l.b16 %v638
    %v811 = vunpack.c.h.b16 %v638
    %v812 = vunpack.c.l.b16 %v639
    %v813 = vunpack.c.h.b16 %v639
    %v814 = vunpack.c.l.b16 %v640
    %v815 = vunpack.c.h.b16 %v640
    %v816 = vunpack.c.l.b16 %v641
    %v817 = vunpack.c.h.b16 %v641
    %v818 = vunpack.c.l.b16 %v642
    %v819 = vunpack.c.h.b16 %v642
    %v820 = vunpack.c.l.b16 %v643
    %v821 = vunpack.c.h.b16 %v643
    %v822 = vunpack.c.l.b16 %v644
    %v823 = vunpack.c.h.b16 %v644
    %v824 = vunpack.c.l.b16 %v645
    %v825 = vunpack.c.h.b16 %v645
    %v826 = vunpack.c.l.b16 %v646
    %v827 = vunpack.c.h.b16 %v646
    %v828 = vunpack.c.l.b16 %v647
    %v829 = vunpack.c.h.b16 %v647
    %v830 = vunpack.c.l.b16 %v648
    %v831 = vunpack.c.h.b16 %v648
    %v832 = vunpack.c.l.b16 %v649
    %v833 = vunpack.c.h.b16 %v649
    %v834 = vunpack.c.l.b16 %v650
    %v835 = vunpack.c.h.b16 %v650
    %v836 = vunpack.c.l.b16 %v651
    %v837 = vunpack.c.h.b16 %v651
    %v838 = vunpack.c.l.b16 %v652
    %v839 = vunpack.c.h.b16 %v652
    %v840 = vunpack.c.l.b16 %v653
    %v841 = vunpack.c.h.b16 %v653
    %v842 = vunpack.c.l.b16 %v654
    %v843 = vunpack.c.h.b16 %v654
    %v844 = vunpack.c.l.b16 %v655
    %v845 = vunpack.c.h.b16 %v655
    %v846 = vunpack.c.l.b16 %v656
    %v847 = vunpack.c.h.b16 %v656
    %v848 = vunpack.c.l.b16 %v657
    %v849 = vunpack.c.h.b16 %v657
    %v850 = vunpack.c.l.b16 %v658
    %v851 = vunpack.c.h.b16 %v658
    %v852 = vunpack.c.l.b16 %v659
    %v853 = vunpack.c.h.b16 %v659
    %v854 = vunpack.c.l.b16 %v660
    %v855 = vunpack.c.h.b16 %v660
    %v856 = vunpack.c.l.b16 %v661
    %v857 = vunpack.c.h.b16 %v661
    %v858 = vunpack.c.l.b16 %v662
    %v859 = vunpack.c.h.b16 %v662
    %v860 = vunpack.c.l.b16 %v663
    %v861 = vunpack.c.h.b16 %v663
    %v862 = vunpack.c.l.b16 %v664
    %v863 = vunpack.c.h.b16 %v664
    %v864 = vunpack.c.l.b16 %v665
    %v865 = vunpack.c.h.b16 %v665
    %v866 = vunpack.c.l.b16 %v666
    %v867 = vunpack.c.h.b16 %v666
    %v868 = vunpack.c.l.b16 %v667
    %v869 = vunpack.c.h.b16 %v667
    %v870 = vunpack.c.l.b16 %v668
    %v871 = vunpack.c.h.b16 %v668
    %v872 = vunpack.c.l.b16 %v669
    %v873 = vunpack.c.h.b16 %v669
    %v874 = vpack.c.b16 %v748, %v746
    %v875 = vpack.c.b16 %v749, %v747
    %v876 = vpack.c.b16 %v752, %v750
    %v877 = vpack.c.b16 %v753, %v751
    %v878 = vpack.c.b16 %v756, %v754
    %v879 = vpack.c.b16 %v757, %v755
    %v880 = vpack.c.b16 %v760, %v758
    %v881 = vpack.c.b16 %v761, %v759
    %v882 = vpack.c.b16 %v764, %v762
    %v883 = vpack.c.b16 %v765, %v763
    %v884 = vpack.c.b16 %v768, %v766
    %v885 = vpack.c.b16 %v769, %v767
    %v886 = vpack.c.b16 %v772, %v770
    %v887 = vpack.c.b16 %v773, %v771
    %v888 = vpack.c.b16 %v776, %v774
    %v889 = vpack.c.b16 %v777, %v775
    %v890 = vpack.c.b16 %v780, %v778
    %v891 = vpack.c.b16 %v781, %v779
    %v892 = vpack.c.b16 %v784, %v782
    %v893 = vpack.c.b16 %v785, %v783
    %v894 = vpack.c.b16 %v788, %v786
    %v895 = vpack.c.b16 %v789, %v787
    %v896 = vpack.c.b16 %v792, %v790
    %v897 = vpack.c.b16 %v793, %v791
    %v898 = vpack.c.b16 %v796, %v794
    %v899 = vpack.c.b16 %v797, %v795
    %v900 = vpack.c.b16 %v800, %v798
    %v901 = vpack.c.b16 %v801, %v799
    %v902 = vpack.c.b16 %v804, %v802
    %v903 = vpack.c.b16 %v805, %v803
    %v904 = vpack.c.b16 %v808, %v806
    %v905 = vpack.c.b16 %v809, %v807
    %v906 = vpack.c.b16 %v812, %v810
    %v907 = vpack.c.b16 %v813, %v811
    %v908 = vpack.c.b16 %v816, %v814
    %v909 = vpack.c.b16 %v817, %v815
    %v910 = vpack.c.b16 %v820, %v818
    %v911 = vpack.c.b16 %v821, %v819
    %v912 = vpack.c.b16 %v824, %v822
    %v913 = vpack.c.b16 %v825, %v823
    %v914 = vpack.c.b16 %v828, %v826
    %v915 = vpack.c.b16 %v829, %v827
    %v916 = vpack.c.b16 %v832, %v830
    %v917 = vpack.c.b16 %v833, %v831
    %v918 = vpack.c.b16 %v836, %v834
    %v919 = vpack.c.b16 %v837, %v835
    %v920 = vpack.c.b16 %v840, %v838
    %v921 = vpack.c.b16 %v841, %v839
    %v922 = vpack.c.b16 %v844, %v842
    %v923 = vpack.c.b16 %v845, %v843
    %v924 = vpack.c.b16 %v848, %v846
    %v925 = vpack.c.b16 %v849, %v847
    %v926 = vpack.c.b16 %v852, %v850
    %v927 = vpack.c.b16 %v853, %v851
    %v928 = vpack.c.b16 %v856, %v854
    %v929 = vpack.c.b16 %v857, %v855
    %v930 = vpack.c.b16 %v860, %v858
    %v931 = vpack.c.b16 %v861, %v859
    %v932 = vpack.c.b16 %v864, %v862
    %v933 = vpack.c.b16 %v865, %v863
    %v934 = vpack.c.b16 %v868, %v866
    %v935 = vpack.c.b16 %v869, %v867
    %v936 = vpack.c.b16 %v872, %v870
    %v937 = vpack.c.b16 %v873, %v871
    %1002 = vmatprep.subr.bf16.mxu0 %v875
    %1003 = vmatpush1.bf16.msra.mxu0 %v874
    %1004 = vmatprep.subr.bf16.mxu0 %v877
    %1005 = vmatpush1.bf16.msra.mxu0 %v876
    %1006 = vmatprep.subr.bf16.mxu0 %v879
    %1007 = vmatpush1.bf16.msra.mxu0 %v878
    %1008 = vmatprep.subr.bf16.mxu0 %v881
    %1009 = vmatpush1.bf16.msra.mxu0 %v880
    %1010 = vmatprep.subr.bf16.mxu0 %v883
    %1011 = vmatpush1.bf16.msra.mxu0 %v882
    %1012 = vmatprep.subr.bf16.mxu0 %v885
    %1013 = vmatpush1.bf16.msra.mxu0 %v884
    %1014 = vmatprep.subr.bf16.mxu0 %v887
    %1015 = vmatpush1.bf16.msra.mxu0 %v886
    %1016 = vmatprep.subr.bf16.mxu0 %v889
    %1017 = vmatpush1.bf16.msra.mxu0 %v888
    %1018 = vmatprep.subr.bf16.mxu0 %v891
    %1019 = vmatpush1.bf16.msra.mxu0 %v890
    %1020 = vmatprep.subr.bf16.mxu0 %v893
    %1021 = vmatpush1.bf16.msra.mxu0 %v892
    %1022 = vmatprep.subr.bf16.mxu0 %v895
    %1023 = vmatpush1.bf16.msra.mxu0 %v894
    %1024 = vmatprep.subr.bf16.mxu0 %v897
    %1025 = vmatpush1.bf16.msra.mxu0 %v896
    %1026 = vmatprep.subr.bf16.mxu0 %v899
    %1027 = vmatpush1.bf16.msra.mxu0 %v898
    %1028 = vmatprep.subr.bf16.mxu0 %v901
    %1029 = vmatpush1.bf16.msra.mxu0 %v900
    %1030 = vmatprep.subr.bf16.mxu0 %v903
    %1031 = vmatpush1.bf16.msra.mxu0 %v902
    %1032 = vmatprep.subr.bf16.mxu0 %v905
    %1033 = vmatpush1.bf16.msra.mxu0 %v904
    %1034 = vmatprep.mubr.bf16.mxu0 %v603
    %1035 = vmatmul.mubr.bf16.gmra.mrb[0].mxu0 %v602
    %v1036 = vpop.f32.mrb[0].mxu0
    %v1037 = vadd.f32 %v675, %v1036
    %v1038 = vpop.f32.mrb[0].mxu0
    %v1039 = vadd.f32 %v679, %v1038
    %v1040 = vpop.f32.mrb[0].mxu0
    %v1041 = vpop.f32.mrb[0].mxu0
    %1042 = vdwg.mxu0
    %1043 = vmatprep.subr.bf16.mxu0 %v907
    %1044 = vmatpush1.bf16.msra.mxu0 %v906
    %1045 = vmatprep.subr.bf16.mxu0 %v909
    %1046 = vmatpush1.bf16.msra.mxu0 %v908
    %1047 = vmatprep.subr.bf16.mxu0 %v911
    %1048 = vmatpush1.bf16.msra.mxu0 %v910
    %1049 = vmatprep.subr.bf16.mxu0 %v913
    %1050 = vmatpush1.bf16.msra.mxu0 %v912
    %1051 = vmatprep.subr.bf16.mxu0 %v915
    %1052 = vmatpush1.bf16.msra.mxu0 %v914
    %1053 = vmatprep.subr.bf16.mxu0 %v917
    %1054 = vmatpush1.bf16.msra.mxu0 %v916
    %1055 = vmatprep.subr.bf16.mxu0 %v919
    %1056 = vmatpush1.bf16.msra.mxu0 %v918
    %1057 = vmatprep.subr.bf16.mxu0 %v921
    %1058 = vmatpush1.bf16.msra.mxu0 %v920
    %1059 = vmatprep.subr.bf16.mxu0 %v923
    %1060 = vmatpush1.bf16.msra.mxu0 %v922
    %1061 = vmatprep.subr.bf16.mxu0 %v925
    %1062 = vmatpush1.bf16.msra.mxu0 %v924
    %1063 = vmatprep.subr.bf16.mxu0 %v927
    %1064 = vmatpush1.bf16.msra.mxu0 %v926
    %1065 = vmatprep.subr.bf16.mxu0 %v929
    %1066 = vmatpush1.bf16.msra.mxu0 %v928
    %1067 = vmatprep.subr.bf16.mxu0 %v931
    %1068 = vmatpush1.bf16.msra.mxu0 %v930
    %1069 = vmatprep.subr.bf16.mxu0 %v933
    %1070 = vmatpush1.bf16.msra.mxu0 %v932
    %1071 = vmatprep.subr.bf16.mxu0 %v935
    %1072 = vmatpush1.bf16.msra.mxu0 %v934
    %1073 = vmatprep.subr.bf16.mxu0 %v937
    %1074 = vmatpush1.bf16.msra.mxu0 %v936
    %1075 = vmatprep.mubr.bf16.mxu0 %v605
    %1076 = vmatmul.mubr.bf16.gmra.mrb[0].mxu0 %v604
    %v1077 = vpop.f32.mrb[0].mxu0
    %v1078 = vadd.f32 %v1037, %v1077
    %v1079 = vpop.f32.mrb[0].mxu0
    %v1080 = vadd.f32 %v1039, %v1079
    %v1081 = vpop.f32.mrb[0].mxu0
    %v1082 = vpop.f32.mrb[0].mxu0
    %1083 = vdwg.mxu0
    %v1084 = vmul.f32 %v1080, 0.5
    %v1085 = vmul.f32 %v1084, 1.442695
    %v1086 = vpow.pop %v1085
    %v1087 = vld [vmem:[%s9] sm:$0xff]
    %v1088 = vmul.f32 %v1086, %v1087
    %v1089 = vadd.f32 %v1078, %v1088
    %v1090 = vpack.c.bf16 %v1089, %v1089
    %v1091 = vld [vmem:[#allocation8] sm:$0xff]
    %v1092 = vld [vmem:[#allocation8 + $0x8] sm:$0xff]
    %v1093 = vld [vmem:[#allocation8 + $0x10] sm:$0xff]
    %v1094 = vld [vmem:[#allocation8 + $0x18] sm:$0xff]
    %v1095 = vld [vmem:[#allocation8 + $0x20] sm:$0xff]
    %v1096 = vld [vmem:[#allocation8 + $0x28] sm:$0xff]
    %v1097 = vld [vmem:[#allocation8 + $0x30] sm:$0xff]
    %v1098 = vld [vmem:[#allocation8 + $0x38] sm:$0xff]
    %v1099 = vld [vmem:[#allocation8 + $0x40] sm:$0xff]
    %v1100 = vld [vmem:[#allocation8 + $0x48] sm:$0xff]
    %v1101 = vld [vmem:[#allocation8 + $0x50] sm:$0xff]
    %v1102 = vld [vmem:[#allocation8 + $0x58] sm:$0xff]
    %v1103 = vld [vmem:[#allocation8 + $0x60] sm:$0xff]
    %v1104 = vld [vmem:[#allocation8 + $0x68] sm:$0xff]
    %v1105 = vld [vmem:[#allocation8 + $0x70] sm:$0xff]
    %v1106 = vld [vmem:[#allocation8 + $0x78] sm:$0xff]
    %v1107 = vld [vmem:[#allocation8 + $0x80] sm:$0xff]
    %v1108 = vld [vmem:[#allocation8 + $0x88] sm:$0xff]
    %v1109 = vld [vmem:[#allocation8 + $0x90] sm:$0xff]
    %v1110 = vld [vmem:[#allocation8 + $0x98] sm:$0xff]
    %v1111 = vld [vmem:[#allocation8 + $0xa0] sm:$0xff]
    %v1112 = vld [vmem:[#allocation8 + $0xa8] sm:$0xff]
    %v1113 = vld [vmem:[#allocation8 + $0xb0] sm:$0xff]
    %v1114 = vld [vmem:[#allocation8 + $0xb8] sm:$0xff]
    %v1115 = vld [vmem:[#allocation8 + $0xc0] sm:$0xff]
    %v1116 = vld [vmem:[#allocation8 + $0xc8] sm:$0xff]
    %v1117 = vld [vmem:[#allocation8 + $0xd0] sm:$0xff]
    %v1118 = vld [vmem:[#allocation8 + $0xd8] sm:$0xff]
    %v1119 = vld [vmem:[#allocation8 + $0xe0] sm:$0xff]
    %v1120 = vld [vmem:[#allocation8 + $0xe8] sm:$0xff]
    %v1121 = vld [vmem:[#allocation8 + $0xf0] sm:$0xff]
    %v1122 = vld [vmem:[#allocation8 + $0xf8] sm:$0xff]
    %v1123 = vld [vmem:[%s6] sm:$0xf]
    %v1125 = vlaneseq
    %v1126 = vshrl.u32 %v1125, 7
    %v1127 = vsub.s32 0, %v1126
    %v1128 = vrot.slane %v1123, %v1127
    %v1129 = vlaneseq
    %v1130 = vshrl.u32 %v1129, 7
    %v1131 = vsub.s32 1, %v1130
    %v1132 = vrot.slane %v1123, %v1131
    %v1133 = vlaneseq
    %v1134 = vshrl.u32 %v1133, 7
    %v1135 = vsub.s32 2, %v1134
    %v1136 = vrot.slane %v1123, %v1135
    %v1137 = vlaneseq
    %v1138 = vshrl.u32 %v1137, 7
    %v1139 = vsub.s32 3, %v1138
    %v1140 = vrot.slane %v1123, %v1139
    %v1177 = vunpack.c.l.b16 %v1091
    %v1178 = vunpack.c.h.b16 %v1091
    %v1179 = vunpack.c.l.b16 %v1092
    %v1180 = vunpack.c.h.b16 %v1092
    %v1181 = vunpack.c.l.b16 %v1093
    %v1182 = vunpack.c.h.b16 %v1093
    %v1183 = vunpack.c.l.b16 %v1094
    %v1184 = vunpack.c.h.b16 %v1094
    %v1185 = vunpack.c.l.b16 %v1095
    %v1186 = vunpack.c.h.b16 %v1095
    %v1187 = vunpack.c.l.b16 %v1096
    %v1188 = vunpack.c.h.b16 %v1096
    %v1189 = vunpack.c.l.b16 %v1097
    %v1190 = vunpack.c.h.b16 %v1097
    %v1191 = vunpack.c.l.b16 %v1098
    %v1192 = vunpack.c.h.b16 %v1098
    %v1193 = vunpack.c.l.b16 %v1099
    %v1194 = vunpack.c.h.b16 %v1099
    %v1195 = vunpack.c.l.b16 %v1100
    %v1196 = vunpack.c.h.b16 %v1100
    %v1197 = vunpack.c.l.b16 %v1101
    %v1198 = vunpack.c.h.b16 %v1101
    %v1199 = vunpack.c.l.b16 %v1102
    %v1200 = vunpack.c.h.b16 %v1102
    %v1201 = vunpack.c.l.b16 %v1103
    %v1202 = vunpack.c.h.b16 %v1103
    %v1203 = vunpack.c.l.b16 %v1104
    %v1204 = vunpack.c.h.b16 %v1104
    %v1205 = vunpack.c.l.b16 %v1105
    %v1206 = vunpack.c.h.b16 %v1105
    %v1207 = vunpack.c.l.b16 %v1106
    %v1208 = vunpack.c.h.b16 %v1106
    %v1209 = vunpack.c.l.b16 %v1107
    %v1210 = vunpack.c.h.b16 %v1107
    %v1211 = vunpack.c.l.b16 %v1108
    %v1212 = vunpack.c.h.b16 %v1108
    %v1213 = vunpack.c.l.b16 %v1109
    %v1214 = vunpack.c.h.b16 %v1109
    %v1215 = vunpack.c.l.b16 %v1110
    %v1216 = vunpack.c.h.b16 %v1110
    %v1217 = vunpack.c.l.b16 %v1111
    %v1218 = vunpack.c.h.b16 %v1111
    %v1219 = vunpack.c.l.b16 %v1112
    %v1220 = vunpack.c.h.b16 %v1112
    %v1221 = vunpack.c.l.b16 %v1113
    %v1222 = vunpack.c.h.b16 %v1113
    %v1223 = vunpack.c.l.b16 %v1114
    %v1224 = vunpack.c.h.b16 %v1114
    %v1225 = vunpack.c.l.b16 %v1115
    %v1226 = vunpack.c.h.b16 %v1115
    %v1227 = vunpack.c.l.b16 %v1116
    %v1228 = vunpack.c.h.b16 %v1116
    %v1229 = vunpack.c.l.b16 %v1117
    %v1230 = vunpack.c.h.b16 %v1117
    %v1231 = vunpack.c.l.b16 %v1118
    %v1232 = vunpack.c.h.b16 %v1118
    %v1233 = vunpack.c.l.b16 %v1119
    %v1234 = vunpack.c.h.b16 %v1119
    %v1235 = vunpack.c.l.b16 %v1120
    %v1236 = vunpack.c.h.b16 %v1120
    %v1237 = vunpack.c.l.b16 %v1121
    %v1238 = vunpack.c.h.b16 %v1121
    %v1239 = vunpack.c.l.b16 %v1122
    %v1240 = vunpack.c.h.b16 %v1122
    %v1241 = vpack.c.b16 %v1181, %v1177
    %v1242 = vpack.c.b16 %v1182, %v1178
    %v1243 = vpack.c.b16 %v1183, %v1179
    %v1244 = vpack.c.b16 %v1184, %v1180
    %v1245 = vpack.c.b16 %v1189, %v1185
    %v1246 = vpack.c.b16 %v1190, %v1186
    %v1247 = vpack.c.b16 %v1191, %v1187
    %v1248 = vpack.c.b16 %v1192, %v1188
    %v1249 = vpack.c.b16 %v1197, %v1193
    %v1250 = vpack.c.b16 %v1198, %v1194
    %v1251 = vpack.c.b16 %v1199, %v1195
    %v1252 = vpack.c.b16 %v1200, %v1196
    %v1253 = vpack.c.b16 %v1205, %v1201
    %v1254 = vpack.c.b16 %v1206, %v1202
    %v1255 = vpack.c.b16 %v1207, %v1203
    %v1256 = vpack.c.b16 %v1208, %v1204
    %v1257 = vpack.c.b16 %v1213, %v1209
    %v1258 = vpack.c.b16 %v1214, %v1210
    %v1259 = vpack.c.b16 %v1215, %v1211
    %v1260 = vpack.c.b16 %v1216, %v1212
    %v1261 = vpack.c.b16 %v1221, %v1217
    %v1262 = vpack.c.b16 %v1222, %v1218
    %v1263 = vpack.c.b16 %v1223, %v1219
    %v1264 = vpack.c.b16 %v1224, %v1220
    %v1265 = vpack.c.b16 %v1229, %v1225
    %v1266 = vpack.c.b16 %v1230, %v1226
    %v1267 = vpack.c.b16 %v1231, %v1227
    %v1268 = vpack.c.b16 %v1232, %v1228
    %v1269 = vpack.c.b16 %v1237, %v1233
    %v1270 = vpack.c.b16 %v1238, %v1234
    %v1271 = vpack.c.b16 %v1239, %v1235
    %v1272 = vpack.c.b16 %v1240, %v1236
    %1305 = vmatprep.subr.bf16.mxu0 %v1242
    %1306 = vmatpush1.bf16.msra.mxu0 %v1241
    %1307 = vmatprep.subr.bf16.mxu0 %v1246
    %1308 = vmatpush1.bf16.msra.mxu0 %v1245
    %1309 = vmatprep.subr.bf16.mxu0 %v1250
    %1310 = vmatpush1.bf16.msra.mxu0 %v1249
    %1311 = vmatprep.subr.bf16.mxu0 %v1254
    %1312 = vmatpush1.bf16.msra.mxu0 %v1253
    %1313 = vmatprep.subr.bf16.mxu0 %v1258
    %1314 = vmatpush1.bf16.msra.mxu0 %v1257
    %1315 = vmatprep.subr.bf16.mxu0 %v1262
    %1316 = vmatpush1.bf16.msra.mxu0 %v1261
    %1317 = vmatprep.subr.bf16.mxu0 %v1266
    %1318 = vmatpush1.bf16.msra.mxu0 %v1265
    %1319 = vmatprep.subr.bf16.mxu0 %v1270
    %1320 = vmatpush1.bf16.msra.mxu0 %v1269
    %1321 = vmatprep.subr.bf16.mxu0 0
    %1322 = vmatpush1.bf16.msra.mxu0 0
    %1323 = vmatprep.subr.bf16.mxu0 0
    %1324 = vmatpush1.bf16.msra.mxu0 0
    %1325 = vmatprep.subr.bf16.mxu0 0
    %1326 = vmatpush1.bf16.msra.mxu0 0
    %1327 = vmatprep.subr.bf16.mxu0 0
    %1328 = vmatpush1.bf16.msra.mxu0 0
    %1329 = vmatprep.subr.bf16.mxu0 0
    %1330 = vmatpush1.bf16.msra.mxu0 0
    %1331 = vmatprep.subr.bf16.mxu0 0
    %1332 = vmatpush1.bf16.msra.mxu0 0
    %1333 = vmatprep.subr.bf16.mxu0 0
    %1334 = vmatpush1.bf16.msra.mxu0 0
    %1335 = vmatprep.subr.bf16.mxu0 0
    %1336 = vmatpush1.bf16.msra.mxu0 0
    %1337 = vmatprep.mubr.bf16.mxu0 0
    %1338 = vmatmul.mubr.bf16.gmra.mrb[0].mxu0 %v1090
    %v1339 = vpop.f32.mrb[0].mxu0
    %v1340 = vadd.f32 %v1128, %v1339
    %v1341 = vpop.f32.mrb[0].mxu0
    %v1342 = vadd.f32 %v1132, %v1341
    %v1343 = vpop.f32.mrb[0].mxu0
    %v1344 = vpop.f32.mrb[0].mxu0
    %1345 = vdwg.mxu0
    %1346 = vmatprep.subr.bf16.mxu0 %v1244
    %1347 = vmatpush1.bf16.msra.mxu0 %v1243
    %1348 = vmatprep.subr.bf16.mxu0 %v1248
    %1349 = vmatpush1.bf16.msra.mxu0 %v1247
    %1350 = vmatprep.subr.bf16.mxu0 %v1252
    %1351 = vmatpush1.bf16.msra.mxu0 %v1251
    %1352 = vmatprep.subr.bf16.mxu0 %v1256
    %1353 = vmatpush1.bf16.msra.mxu0 %v1255
    %1354 = vmatprep.subr.bf16.mxu0 %v1260
    %1355 = vmatpush1.bf16.msra.mxu0 %v1259
    %1356 = vmatprep.subr.bf16.mxu0 %v1264
    %1357 = vmatpush1.bf16.msra.mxu0 %v1263
    %1358 = vmatprep.subr.bf16.mxu0 %v1268
    %1359 = vmatpush1.bf16.msra.mxu0 %v1267
    %1360 = vmatprep.subr.bf16.mxu0 %v1272
    %1361 = vmatpush1.bf16.msra.mxu0 %v1271
    %1362 = vmatprep.subr.bf16.mxu0 0
    %1363 = vmatpush1.bf16.msra.mxu0 0
    %1364 = vmatprep.subr.bf16.mxu0 0
    %1365 = vmatpush1.bf16.msra.mxu0 0
    %1366 = vmatprep.subr.bf16.mxu0 0
    %1367 = vmatpush1.bf16.msra.mxu0 0
    %1368 = vmatprep.subr.bf16.mxu0 0
    %1369 = vmatpush1.bf16.msra.mxu0 0
    %1370 = vmatprep.subr.bf16.mxu0 0
    %1371 = vmatpush1.bf16.msra.mxu0 0
    %1372 = vmatprep.subr.bf16.mxu0 0
    %1373 = vmatpush1.bf16.msra.mxu0 0
    %1374 = vmatprep.subr.bf16.mxu0 0
    %1375 = vmatpush1.bf16.msra.mxu0 0
    %1376 = vmatprep.subr.bf16.mxu0 0
    %1377 = vmatpush1.bf16.msra.mxu0 0
    %1378 = vmatprep.mubr.bf16.mxu0 0
    %1379 = vmatmul.mubr.bf16.gmra.mrb[0].mxu0 %v1090
    %v1380 = vpop.f32.mrb[0].mxu0
    %v1381 = vadd.f32 %v1136, %v1380
    %v1382 = vpop.f32.mrb[0].mxu0
    %v1383 = vadd.f32 %v1140, %v1382
    %v1384 = vpop.f32.mrb[0].mxu0
    %v1385 = vpop.f32.mrb[0].mxu0
    %1386 = vdwg.mxu0
    %v1387 = vmax.f32 %v1340, 0.0
    %v1388 = vmax.f32 %v1342, 0.0
    %v1389 = vmax.f32 %v1381, 0.0
    %v1390 = vmax.f32 %v1383, 0.0
    %v1391 = vpack.c.bf16 %v1387, %v1387
    %v1392 = vpack.c.bf16 %v1388, %v1388
    %v1393 = vpack.c.bf16 %v1389, %v1389
    %v1394 = vpack.c.bf16 %v1390, %v1390
    %v1395 = vld [vmem:[#allocation10] sm:$0xff]
    %v1396 = vld [vmem:[#allocation10 + $0x8] sm:$0xff]
    %v1397 = vld [vmem:[#allocation10 + $0x10] sm:$0xff]
    %v1398 = vld [vmem:[#allocation10 + $0x18] sm:$0xff]
    %v1399 = vld [vmem:[#allocation10 + $0x20] sm:$0xff]
    %v1400 = vld [vmem:[#allocation10 + $0x28] sm:$0xff]
    %v1401 = vld [vmem:[#allocation10 + $0x30] sm:$0xff]
    %v1402 = vld [vmem:[#allocation10 + $0x38] sm:$0xff]
    %v1403 = vld [vmem:[#allocation10 + $0x40] sm:$0xff]
    %v1404 = vld [vmem:[#allocation10 + $0x48] sm:$0xff]
    %v1405 = vld [vmem:[#allocation10 + $0x50] sm:$0xff]
    %v1406 = vld [vmem:[#allocation10 + $0x58] sm:$0xff]
    %v1407 = vld [vmem:[#allocation10 + $0x60] sm:$0xff]
    %v1408 = vld [vmem:[#allocation10 + $0x68] sm:$0xff]
    %v1409 = vld [vmem:[#allocation10 + $0x70] sm:$0xff]
    %v1410 = vld [vmem:[#allocation10 + $0x78] sm:$0xff]
    %v1411 = vld [vmem:[#allocation10 + $0x80] sm:$0xff]
    %v1412 = vld [vmem:[#allocation10 + $0x88] sm:$0xff]
    %v1413 = vld [vmem:[#allocation10 + $0x90] sm:$0xff]
    %v1414 = vld [vmem:[#allocation10 + $0x98] sm:$0xff]
    %v1415 = vld [vmem:[#allocation10 + $0xa0] sm:$0xff]
    %v1416 = vld [vmem:[#allocation10 + $0xa8] sm:$0xff]
    %v1417 = vld [vmem:[#allocation10 + $0xb0] sm:$0xff]
    %v1418 = vld [vmem:[#allocation10 + $0xb8] sm:$0xff]
    %v1419 = vld [vmem:[#allocation10 + $0xc0] sm:$0xff]
    %v1420 = vld [vmem:[#allocation10 + $0xc8] sm:$0xff]
    %v1421 = vld [vmem:[#allocation10 + $0xd0] sm:$0xff]
    %v1422 = vld [vmem:[#allocation10 + $0xd8] sm:$0xff]
    %v1423 = vld [vmem:[#allocation10 + $0xe0] sm:$0xff]
    %v1424 = vld [vmem:[#allocation10 + $0xe8] sm:$0xff]
    %v1425 = vld [vmem:[#allocation10 + $0xf0] sm:$0xff]
    %v1426 = vld [vmem:[#allocation10 + $0xf8] sm:$0xff]
    %v1427 = vld [vmem:[#allocation10 + $0x100] sm:$0xff]
    %v1428 = vld [vmem:[#allocation10 + $0x108] sm:$0xff]
    %v1429 = vld [vmem:[#allocation10 + $0x110] sm:$0xff]
    %v1430 = vld [vmem:[#allocation10 + $0x118] sm:$0xff]
    %v1431 = vld [vmem:[#allocation10 + $0x120] sm:$0xff]
    %v1432 = vld [vmem:[#allocation10 + $0x128] sm:$0xff]
    %v1433 = vld [vmem:[#allocation10 + $0x130] sm:$0xff]
    %v1434 = vld [vmem:[#allocation10 + $0x138] sm:$0xff]
    %v1435 = vld [vmem:[#allocation10 + $0x140] sm:$0xff]
    %v1436 = vld [vmem:[#allocation10 + $0x148] sm:$0xff]
    %v1437 = vld [vmem:[#allocation10 + $0x150] sm:$0xff]
    %v1438 = vld [vmem:[#allocation10 + $0x158] sm:$0xff]
    %v1439 = vld [vmem:[#allocation10 + $0x160] sm:$0xff]
    %v1440 = vld [vmem:[#allocation10 + $0x168] sm:$0xff]
    %v1441 = vld [vmem:[#allocation10 + $0x170] sm:$0xff]
    %v1442 = vld [vmem:[#allocation10 + $0x178] sm:$0xff]
    %v1443 = vld [vmem:[#allocation10 + $0x180] sm:$0xff]
    %v1444 = vld [vmem:[#allocation10 + $0x188] sm:$0xff]
    %v1445 = vld [vmem:[#allocation10 + $0x190] sm:$0xff]
    %v1446 = vld [vmem:[#allocation10 + $0x198] sm:$0xff]
    %v1447 = vld [vmem:[#allocation10 + $0x1a0] sm:$0xff]
    %v1448 = vld [vmem:[#allocation10 + $0x1a8] sm:$0xff]
    %v1449 = vld [vmem:[#allocation10 + $0x1b0] sm:$0xff]
    %v1450 = vld [vmem:[#allocation10 + $0x1b8] sm:$0xff]
    %v1451 = vld [vmem:[#allocation10 + $0x1c0] sm:$0xff]
    %v1452 = vld [vmem:[#allocation10 + $0x1c8] sm:$0xff]
    %v1453 = vld [vmem:[#allocation10 + $0x1d0] sm:$0xff]
    %v1454 = vld [vmem:[#allocation10 + $0x1d8] sm:$0xff]
    %v1455 = vld [vmem:[#allocation10 + $0x1e0] sm:$0xff]
    %v1456 = vld [vmem:[#allocation10 + $0x1e8] sm:$0xff]
    %v1457 = vld [vmem:[#allocation10 + $0x1f0] sm:$0xff]
    %v1458 = vld [vmem:[#allocation10 + $0x1f8] sm:$0xff]
    %v1459 = vld [vmem:[%s8] sm:$0x3]
    %v1461 = vlaneseq
    %v1462 = vshrl.u32 %v1461, 7
    %v1463 = vsub.s32 0, %v1462
    %v1464 = vrot.slane %v1459, %v1463
    %v1465 = vlaneseq
    %v1466 = vshrl.u32 %v1465, 7
    %v1467 = vsub.s32 1, %v1466
    %v1468 = vrot.slane %v1459, %v1467
    %v1535 = vunpack.c.l.b16 %v1395
    %v1536 = vunpack.c.h.b16 %v1395
    %v1537 = vunpack.c.l.b16 %v1396
    %v1538 = vunpack.c.h.b16 %v1396
    %v1539 = vunpack.c.l.b16 %v1397
    %v1540 = vunpack.c.h.b16 %v1397
    %v1541 = vunpack.c.l.b16 %v1398
    %v1542 = vunpack.c.h.b16 %v1398
    %v1543 = vunpack.c.l.b16 %v1399
    %v1544 = vunpack.c.h.b16 %v1399
    %v1545 = vunpack.c.l.b16 %v1400
    %v1546 = vunpack.c.h.b16 %v1400
    %v1547 = vunpack.c.l.b16 %v1401
    %v1548 = vunpack.c.h.b16 %v1401
    %v1549 = vunpack.c.l.b16 %v1402
    %v1550 = vunpack.c.h.b16 %v1402
    %v1551 = vunpack.c.l.b16 %v1403
    %v1552 = vunpack.c.h.b16 %v1403
    %v1553 = vunpack.c.l.b16 %v1404
    %v1554 = vunpack.c.h.b16 %v1404
    %v1555 = vunpack.c.l.b16 %v1405
    %v1556 = vunpack.c.h.b16 %v1405
    %v1557 = vunpack.c.l.b16 %v1406
    %v1558 = vunpack.c.h.b16 %v1406
    %v1559 = vunpack.c.l.b16 %v1407
    %v1560 = vunpack.c.h.b16 %v1407
    %v1561 = vunpack.c.l.b16 %v1408
    %v1562 = vunpack.c.h.b16 %v1408
    %v1563 = vunpack.c.l.b16 %v1409
    %v1564 = vunpack.c.h.b16 %v1409
    %v1565 = vunpack.c.l.b16 %v1410
    %v1566 = vunpack.c.h.b16 %v1410
    %v1567 = vunpack.c.l.b16 %v1411
    %v1568 = vunpack.c.h.b16 %v1411
    %v1569 = vunpack.c.l.b16 %v1412
    %v1570 = vunpack.c.h.b16 %v1412
    %v1571 = vunpack.c.l.b16 %v1413
    %v1572 = vunpack.c.h.b16 %v1413
    %v1573 = vunpack.c.l.b16 %v1414
    %v1574 = vunpack.c.h.b16 %v1414
    %v1575 = vunpack.c.l.b16 %v1415
    %v1576 = vunpack.c.h.b16 %v1415
    %v1577 = vunpack.c.l.b16 %v1416
    %v1578 = vunpack.c.h.b16 %v1416
    %v1579 = vunpack.c.l.b16 %v1417
    %v1580 = vunpack.c.h.b16 %v1417
    %v1581 = vunpack.c.l.b16 %v1418
    %v1582 = vunpack.c.h.b16 %v1418
    %v1583 = vunpack.c.l.b16 %v1419
    %v1584 = vunpack.c.h.b16 %v1419
    %v1585 = vunpack.c.l.b16 %v1420
    %v1586 = vunpack.c.h.b16 %v1420
    %v1587 = vunpack.c.l.b16 %v1421
    %v1588 = vunpack.c.h.b16 %v1421
    %v1589 = vunpack.c.l.b16 %v1422
    %v1590 = vunpack.c.h.b16 %v1422
    %v1591 = vunpack.c.l.b16 %v1423
    %v1592 = vunpack.c.h.b16 %v1423
    %v1593 = vunpack.c.l.b16 %v1424
    %v1594 = vunpack.c.h.b16 %v1424
    %v1595 = vunpack.c.l.b16 %v1425
    %v1596 = vunpack.c.h.b16 %v1425
    %v1597 = vunpack.c.l.b16 %v1426
    %v1598 = vunpack.c.h.b16 %v1426
    %v1599 = vunpack.c.l.b16 %v1427
    %v1600 = vunpack.c.h.b16 %v1427
    %v1601 = vunpack.c.l.b16 %v1428
    %v1602 = vunpack.c.h.b16 %v1428
    %v1603 = vunpack.c.l.b16 %v1429
    %v1604 = vunpack.c.h.b16 %v1429
    %v1605 = vunpack.c.l.b16 %v1430
    %v1606 = vunpack.c.h.b16 %v1430
    %v1607 = vunpack.c.l.b16 %v1431
    %v1608 = vunpack.c.h.b16 %v1431
    %v1609 = vunpack.c.l.b16 %v1432
    %v1610 = vunpack.c.h.b16 %v1432
    %v1611 = vunpack.c.l.b16 %v1433
    %v1612 = vunpack.c.h.b16 %v1433
    %v1613 = vunpack.c.l.b16 %v1434
    %v1614 = vunpack.c.h.b16 %v1434
    %v1615 = vunpack.c.l.b16 %v1435
    %v1616 = vunpack.c.h.b16 %v1435
    %v1617 = vunpack.c.l.b16 %v1436
    %v1618 = vunpack.c.h.b16 %v1436
    %v1619 = vunpack.c.l.b16 %v1437
    %v1620 = vunpack.c.h.b16 %v1437
    %v1621 = vunpack.c.l.b16 %v1438
    %v1622 = vunpack.c.h.b16 %v1438
    %v1623 = vunpack.c.l.b16 %v1439
    %v1624 = vunpack.c.h.b16 %v1439
    %v1625 = vunpack.c.l.b16 %v1440
    %v1626 = vunpack.c.h.b16 %v1440
    %v1627 = vunpack.c.l.b16 %v1441
    %v1628 = vunpack.c.h.b16 %v1441
    %v1629 = vunpack.c.l.b16 %v1442
    %v1630 = vunpack.c.h.b16 %v1442
    %v1631 = vunpack.c.l.b16 %v1443
    %v1632 = vunpack.c.h.b16 %v1443
    %v1633 = vunpack.c.l.b16 %v1444
    %v1634 = vunpack.c.h.b16 %v1444
    %v1635 = vunpack.c.l.b16 %v1445
    %v1636 = vunpack.c.h.b16 %v1445
    %v1637 = vunpack.c.l.b16 %v1446
    %v1638 = vunpack.c.h.b16 %v1446
    %v1639 = vunpack.c.l.b16 %v1447
    %v1640 = vunpack.c.h.b16 %v1447
    %v1641 = vunpack.c.l.b16 %v1448
    %v1642 = vunpack.c.h.b16 %v1448
    %v1643 = vunpack.c.l.b16 %v1449
    %v1644 = vunpack.c.h.b16 %v1449
    %v1645 = vunpack.c.l.b16 %v1450
    %v1646 = vunpack.c.h.b16 %v1450
    %v1647 = vunpack.c.l.b16 %v1451
    %v1648 = vunpack.c.h.b16 %v1451
    %v1649 = vunpack.c.l.b16 %v1452
    %v1650 = vunpack.c.h.b16 %v1452
    %v1651 = vunpack.c.l.b16 %v1453
    %v1652 = vunpack.c.h.b16 %v1453
    %v1653 = vunpack.c.l.b16 %v1454
    %v1654 = vunpack.c.h.b16 %v1454
    %v1655 = vunpack.c.l.b16 %v1455
    %v1656 = vunpack.c.h.b16 %v1455
    %v1657 = vunpack.c.l.b16 %v1456
    %v1658 = vunpack.c.h.b16 %v1456
    %v1659 = vunpack.c.l.b16 %v1457
    %v1660 = vunpack.c.h.b16 %v1457
    %v1661 = vunpack.c.l.b16 %v1458
    %v1662 = vunpack.c.h.b16 %v1458
    %v1663 = vpack.c.b16 %v1537, %v1535
    %v1664 = vpack.c.b16 %v1538, %v1536
    %v1665 = vpack.c.b16 %v1541, %v1539
    %v1666 = vpack.c.b16 %v1542, %v1540
    %v1667 = vpack.c.b16 %v1545, %v1543
    %v1668 = vpack.c.b16 %v1546, %v1544
    %v1669 = vpack.c.b16 %v1549, %v1547
    %v1670 = vpack.c.b16 %v1550, %v1548
    %v1671 = vpack.c.b16 %v1553, %v1551
    %v1672 = vpack.c.b16 %v1554, %v1552
    %v1673 = vpack.c.b16 %v1557, %v1555
    %v1674 = vpack.c.b16 %v1558, %v1556
    %v1675 = vpack.c.b16 %v1561, %v1559
    %v1676 = vpack.c.b16 %v1562, %v1560
    %v1677 = vpack.c.b16 %v1565, %v1563
    %v1678 = vpack.c.b16 %v1566, %v1564
    %v1679 = vpack.c.b16 %v1569, %v1567
    %v1680 = vpack.c.b16 %v1570, %v1568
    %v1681 = vpack.c.b16 %v1573, %v1571
    %v1682 = vpack.c.b16 %v1574, %v1572
    %v1683 = vpack.c.b16 %v1577, %v1575
    %v1684 = vpack.c.b16 %v1578, %v1576
    %v1685 = vpack.c.b16 %v1581, %v1579
    %v1686 = vpack.c.b16 %v1582, %v1580
    %v1687 = vpack.c.b16 %v1585, %v1583
    %v1688 = vpack.c.b16 %v1586, %v1584
    %v1689 = vpack.c.b16 %v1589, %v1587
    %v1690 = vpack.c.b16 %v1590, %v1588
    %v1691 = vpack.c.b16 %v1593, %v1591
    %v1692 = vpack.c.b16 %v1594, %v1592
    %v1693 = vpack.c.b16 %v1597, %v1595
    %v1694 = vpack.c.b16 %v1598, %v1596
    %v1695 = vpack.c.b16 %v1601, %v1599
    %v1696 = vpack.c.b16 %v1602, %v1600
    %v1697 = vpack.c.b16 %v1605, %v1603
    %v1698 = vpack.c.b16 %v1606, %v1604
    %v1699 = vpack.c.b16 %v1609, %v1607
    %v1700 = vpack.c.b16 %v1610, %v1608
    %v1701 = vpack.c.b16 %v1613, %v1611
    %v1702 = vpack.c.b16 %v1614, %v1612
    %v1703 = vpack.c.b16 %v1617, %v1615
    %v1704 = vpack.c.b16 %v1618, %v1616
    %v1705 = vpack.c.b16 %v1621, %v1619
    %v1706 = vpack.c.b16 %v1622, %v1620
    %v1707 = vpack.c.b16 %v1625, %v1623
    %v1708 = vpack.c.b16 %v1626, %v1624
    %v1709 = vpack.c.b16 %v1629, %v1627
    %v1710 = vpack.c.b16 %v1630, %v1628
    %v1711 = vpack.c.b16 %v1633, %v1631
    %v1712 = vpack.c.b16 %v1634, %v1632
    %v1713 = vpack.c.b16 %v1637, %v1635
    %v1714 = vpack.c.b16 %v1638, %v1636
    %v1715 = vpack.c.b16 %v1641, %v1639
    %v1716 = vpack.c.b16 %v1642, %v1640
    %v1717 = vpack.c.b16 %v1645, %v1643
    %v1718 = vpack.c.b16 %v1646, %v1644
    %v1719 = vpack.c.b16 %v1649, %v1647
    %v1720 = vpack.c.b16 %v1650, %v1648
    %v1721 = vpack.c.b16 %v1653, %v1651
    %v1722 = vpack.c.b16 %v1654, %v1652
    %v1723 = vpack.c.b16 %v1657, %v1655
    %v1724 = vpack.c.b16 %v1658, %v1656
    %v1725 = vpack.c.b16 %v1661, %v1659
    %v1726 = vpack.c.b16 %v1662, %v1660
    %1791 = vmatprep.subr.bf16.mxu0 %v1664
    %1792 = vmatpush1.bf16.msra.mxu0 %v1663
    %1793 = vmatprep.subr.bf16.mxu0 %v1666
    %1794 = vmatpush1.bf16.msra.mxu0 %v1665
    %1795 = vmatprep.subr.bf16.mxu0 %v1668
    %1796 = vmatpush1.bf16.msra.mxu0 %v1667
    %1797 = vmatprep.subr.bf16.mxu0 %v1670
    %1798 = vmatpush1.bf16.msra.mxu0 %v1669
    %1799 = vmatprep.subr.bf16.mxu0 %v1672
    %1800 = vmatpush1.bf16.msra.mxu0 %v1671
    %1801 = vmatprep.subr.bf16.mxu0 %v1674
    %1802 = vmatpush1.bf16.msra.mxu0 %v1673
    %1803 = vmatprep.subr.bf16.mxu0 %v1676
    %1804 = vmatpush1.bf16.msra.mxu0 %v1675
    %1805 = vmatprep.subr.bf16.mxu0 %v1678
    %1806 = vmatpush1.bf16.msra.mxu0 %v1677
    %1807 = vmatprep.subr.bf16.mxu0 %v1680
    %1808 = vmatpush1.bf16.msra.mxu0 %v1679
    %1809 = vmatprep.subr.bf16.mxu0 %v1682
    %1810 = vmatpush1.bf16.msra.mxu0 %v1681
    %1811 = vmatprep.subr.bf16.mxu0 %v1684
    %1812 = vmatpush1.bf16.msra.mxu0 %v1683
    %1813 = vmatprep.subr.bf16.mxu0 %v1686
    %1814 = vmatpush1.bf16.msra.mxu0 %v1685
    %1815 = vmatprep.subr.bf16.mxu0 %v1688
    %1816 = vmatpush1.bf16.msra.mxu0 %v1687
    %1817 = vmatprep.subr.bf16.mxu0 %v1690
    %1818 = vmatpush1.bf16.msra.mxu0 %v1689
    %1819 = vmatprep.subr.bf16.mxu0 %v1692
    %1820 = vmatpush1.bf16.msra.mxu0 %v1691
    %1821 = vmatprep.subr.bf16.mxu0 %v1694
    %1822 = vmatpush1.bf16.msra.mxu0 %v1693
    %1823 = vmatprep.mubr.bf16.mxu0 %v1392
    %1824 = vmatmul.mubr.bf16.gmra.mrb[0].mxu0 %v1391
    %v1825 = vpop.f32.mrb[0].mxu0
    %v1826 = vadd.f32 %v1464, %v1825
    %v1827 = vpop.f32.mrb[0].mxu0
    %v1828 = vadd.f32 %v1468, %v1827
    %v1829 = vpop.f32.mrb[0].mxu0
    %v1830 = vpop.f32.mrb[0].mxu0
    %1831 = vdwg.mxu0
    %1832 = vmatprep.subr.bf16.mxu0 %v1696
    %1833 = vmatpush1.bf16.msra.mxu0 %v1695
    %1834 = vmatprep.subr.bf16.mxu0 %v1698
    %1835 = vmatpush1.bf16.msra.mxu0 %v1697
    %1836 = vmatprep.subr.bf16.mxu0 %v1700
    %1837 = vmatpush1.bf16.msra.mxu0 %v1699
    %1838 = vmatprep.subr.bf16.mxu0 %v1702
    %1839 = vmatpush1.bf16.msra.mxu0 %v1701
    %1840 = vmatprep.subr.bf16.mxu0 %v1704
    %1841 = vmatpush1.bf16.msra.mxu0 %v1703
    %1842 = vmatprep.subr.bf16.mxu0 %v1706
    %1843 = vmatpush1.bf16.msra.mxu0 %v1705
    %1844 = vmatprep.subr.bf16.mxu0 %v1708
    %1845 = vmatpush1.bf16.msra.mxu0 %v1707
    %1846 = vmatprep.subr.bf16.mxu0 %v1710
    %1847 = vmatpush1.bf16.msra.mxu0 %v1709
    %1848 = vmatprep.subr.bf16.mxu0 %v1712
    %1849 = vmatpush1.bf16.msra.mxu0 %v1711
    %1850 = vmatprep.subr.bf16.mxu0 %v1714
    %1851 = vmatpush1.bf16.msra.mxu0 %v1713
    %1852 = vmatprep.subr.bf16.mxu0 %v1716
    %1853 = vmatpush1.bf16.msra.mxu0 %v1715
    %1854 = vmatprep.subr.bf16.mxu0 %v1718
    %1855 = vmatpush1.bf16.msra.mxu0 %v1717
    %1856 = vmatprep.subr.bf16.mxu0 %v1720
    %1857 = vmatpush1.bf16.msra.mxu0 %v1719
    %1858 = vmatprep.subr.bf16.mxu0 %v1722
    %1859 = vmatpush1.bf16.msra.mxu0 %v1721
    %1860 = vmatprep.subr.bf16.mxu0 %v1724
    %1861 = vmatpush1.bf16.msra.mxu0 %v1723
    %1862 = vmatprep.subr.bf16.mxu0 %v1726
    %1863 = vmatpush1.bf16.msra.mxu0 %v1725
    %1864 = vmatprep.mubr.bf16.mxu0 %v1394
    %1865 = vmatmul.mubr.bf16.gmra.mrb[0].mxu0 %v1393
    %v1866 = vpop.f32.mrb[0].mxu0
    %v1867 = vadd.f32 %v1826, %v1866
    %v1868 = vpop.f32.mrb[0].mxu0
    %v1869 = vadd.f32 %v1828, %v1868
    %v1870 = vpop.f32.mrb[0].mxu0
    %v1871 = vpop.f32.mrb[0].mxu0
    %1872 = vdwg.mxu0
    %1873 = vst [vmem:[#allocation11] sm:$0xff] %v1867
    %1874 = vst [vmem:[#allocation11 + $0x8] sm:$0xff] %v1869
    %v1875 = vadd.f32 %v1080, 1.0
    %v1876 = vmul.f32 %v1078, %v1078
    %v1877 = vsub.f32 %v1875, %v1876
    %v1878 = vmul.f32 %v1086, %v1086
    %v1879 = vsub.f32 %v1877, %v1878
    %v1880 = vrot.slane %v1879, 4
    %v1881 = vadd.f32 %v1879, %v1880
    %v1882 = vrot.slane %v1881, 2
    %v1883 = vadd.f32 %v1881, %v1882
    %v1884 = vrot.slane %v1883, 1
    %v1885 = vadd.f32 %v1883, %v1884
    %1886 = vst [vmem:[#allocation12] sm:$0x1] %v1885
    // Predicated region
    $region62: #{tpu_custom_call.1} parent=1 // pred_check
      _
    $region63: #{tpu_custom_call.1} parent=1 // pred_check_branch
      %1888 = sbr.rel (0) target = $region65
    $region64: #{tpu_custom_call.1} parent=1 // pred_region
      %s1890 = ssub.s32 256, 256
      %1891 = vsyncadd [#allocation4], %s1890
      %s1893 = sshll.u32 [#allocation11], 4
      %s1894 = int_to_ptr.vmem [resolvable:$true] %s1893
      %1896 = dma.vmem_to_hbm [thread:$0]  %s1894, 256, %s10, [#allocation4]
    $region65: #{tpu_custom_call.1} parent=1 // pred_fallthru
      _
    // Predicated region
    $region66: #{tpu_custom_call.1} parent=1 // pred_check
      _
    $region67: #{tpu_custom_call.1} parent=1 // pred_check_branch
      %1898 = sbr.rel (0) target = $region69
    $region68: #{tpu_custom_call.1} parent=1 // pred_region
      %s1900 = ssub.s32 16, 16
      %1901 = vsyncadd [#allocation13], %s1900
      %s1903 = sshll.u32 [#allocation12], 4
      %s1904 = int_to_ptr.vmem [resolvable:$true] %s1903
      %1906 = dma.vmem_to_hbm [thread:$0]  %s1904, 16, %s11, [#allocation13]
    $region69: #{tpu_custom_call.1} parent=1 // pred_fallthru
      _
    // Predicated region
    $region70: #{tpu_custom_call.1} parent=1 // pred_check
      _
    $region71: #{tpu_custom_call.1} parent=1 // pred_check_branch
      %1908 = sbr.rel (0) target = $region73
    $region72: #{tpu_custom_call.1} parent=1 // pred_region
      %1909 = dma.done [#allocation4], 256
    $region73: #{tpu_custom_call.1} parent=1 // pred_fallthru
      _
    // Predicated region
    $region74: #{tpu_custom_call.1} parent=1 // pred_check
      _
    $region75: #{tpu_custom_call.1} parent=1 // pred_check_branch
      %1911 = sbr.rel (0) target = $region77
    $region76: #{tpu_custom_call.1} parent=1 // pred_region
      %1912 = dma.done [#allocation13], 16
    $region77: #{tpu_custom_call.1} parent=1 // pred_fallthru
      _
    %1913 = vsyncpa [#allocation3], 1
    %1914 = vsyncpa [#allocation6], 1
    %1915 = vsyncpa [#allocation9], 1
    %1916 = vsyncpa [#allocation4], 1
    %1917 = vsyncpa [#allocation13], 1

</llo_original>
